<compile_context>
chip_gen: v7x
topology: tpu7x:2x2x1
jax: 0.10.0
libtpu: 0.0.40
codegen_flags: <defaults>
</compile_context>

<pallas_src>
import jax
import jax.numpy as jnp
from jax.experimental import pallas as pl
from jax.experimental.pallas import tpu as pltpu

CLASSES = 10
IN_DIM = 28 * 28      # 784
H0 = 64               # fc0 output width (logical)
H1 = 32               # fc1 output width (logical)
HPAD = 128            # lane-aligned padded width for hidden/classifier lanes
BATCH_TILE = 256      # batch rows per grid step (multiple of 256 and 128)
NEG_INF = -1e9        # padding bias for fake class lanes (exp() underflows to 0)


def mlp_kernel(x_ref, w0_ref, b0_ref, w1_ref, b1_ref, w2_ref, b2_ref, o_ref):
    """Whole forward pass for one batch tile: 3 MXU matmuls + ReLU + log_softmax.

    x / weights are bf16; accumulation and epilogue math are f32.
    All feature axes are padded to 128 lanes (zero weights / -1e9 class bias),
    so every load/store is lane-dense and unmasked.
    """
    x = x_ref[...]                                                    # (Bt, 784) bf16

    # fc0 + ReLU  (dropout is identity in eval mode)
    h = jnp.dot(x, w0_ref[...], preferred_element_type=jnp.float32)   # (Bt, 128) f32
    h = jnp.maximum(h + b0_ref[...], 0.0)
    # TODO(synk): training-mode dropout (pltpu.prng_* + mask/scale) not emitted;
    # eval-mode dropout is the identity, which is what this kernel implements.

    # fc1 + ReLU  (padded lanes stay exactly 0: zero weights, zero bias, ReLU)
    h = jnp.dot(h.astype(jnp.bfloat16), w1_ref[...],
                preferred_element_type=jnp.float32)
    h = jnp.maximum(h + b1_ref[...], 0.0)

    # fc2 (classifier head); padded class lanes get bias -1e9 -> exp() == 0
    logits = jnp.dot(h.astype(jnp.bfloat16), w2_ref[...],
                     preferred_element_type=jnp.float32) + b2_ref[...]

    # log_softmax along the class axis (dim=1 in PyTorch == last axis here)
    m = jnp.max(logits, axis=-1, keepdims=True)
    shifted = logits - m
    lse = jnp.log(jnp.sum(jnp.exp(shifted), axis=-1, keepdims=True))
    o_ref[...] = (shifted - lse).astype(o_ref.dtype)                  # (Bt, 128)


def _round_up(x, m):
    return ((x + m - 1) // m) * m


def pack_params(params):
    """Pad the logical (fan_in, fan_out) f32 params to lane-aligned bf16 slabs."""
    w0, b0, w1, b1, w2, b2 = params
    w0p = jnp.zeros((IN_DIM, HPAD), jnp.bfloat16).at[:, :H0].set(w0.astype(jnp.bfloat16))
    b0p = jnp.zeros((1, HPAD), jnp.float32).at[:, :H0].set(b0)
    w1p = jnp.zeros((HPAD, HPAD), jnp.bfloat16).at[:H0, :H1].set(w1.astype(jnp.bfloat16))
    b1p = jnp.zeros((1, HPAD), jnp.float32).at[:, :H1].set(b1)
    w2p = jnp.zeros((HPAD, HPAD), jnp.bfloat16).at[:H1, :CLASSES].set(w2.astype(jnp.bfloat16))
    b2p = jnp.full((1, HPAD), NEG_INF, jnp.float32).at[:, :CLASSES].set(b2)
    return w0p, b0p, w1p, b1p, w2p, b2p


def net_forward(x_nchw, params):
    """x_nchw: (B, 1, 28, 28) float32. Returns (B, CLASSES) log-probabilities."""
    B = x_nchw.shape[0]
    x = x_nchw.reshape(B, IN_DIM)                     # == data.view(-1, 28*28)

    # Pad the batch to a multiple of the tile; padded rows are zeros and get
    # sliced away after the call (each row is independent).
    padded_B = _round_up(B, BATCH_TILE)
    if padded_B != B:
        x = jnp.concatenate(
            [x, jnp.zeros((padded_B - B, IN_DIM), x.dtype)], axis=0)
    x = x.astype(jnp.bfloat16)

    w0p, b0p, w1p, b1p, w2p, b2p = pack_params(params)

    grid = (padded_B // BATCH_TILE,)

    # Weights/biases are small and resident: full-tensor blocks, constant (0,0)
    # index_map. Only the batch axis of x / out is tiled.
    full = lambda shape: pl.BlockSpec(shape, lambda i: (0, 0))

    cost = pl.CostEstimate(
        flops=2 * padded_B * (IN_DIM * HPAD + HPAD * HPAD + HPAD * HPAD),
        transcendentals=padded_B * (HPAD + 1),        # exp per lane + log per row
        bytes_accessed=(padded_B * IN_DIM * 2                    # bf16 input
                        + (IN_DIM * HPAD + 2 * HPAD * HPAD) * 2  # bf16 weights
                        + 3 * HPAD * 4                           # f32 biases
                        + padded_B * HPAD * 4),                  # f32 output
    )

    out_padded = pl.pallas_call(
        mlp_kernel,
        out_shape=jax.ShapeDtypeStruct((padded_B, HPAD), jnp.float32),
        grid_spec=pl.GridSpec(
            grid=grid,
            in_specs=[
                pl.BlockSpec((BATCH_TILE, IN_DIM), lambda i: (i, 0)),  # x tile
                full((IN_DIM, HPAD)),     # w0
                full((1, HPAD)),          # b0
                full((HPAD, HPAD)),       # w1
                full((1, HPAD)),          # b1
                full((HPAD, HPAD)),       # w2
                full((1, HPAD)),          # b2
            ],
            out_specs=pl.BlockSpec((BATCH_TILE, HPAD), lambda i: (i, 0)),
        ),
        compiler_params=pltpu.CompilerParams(
            dimension_semantics=("parallel",),
        ),
        cost_estimate=cost,
    )(x, w0p, b0p, w1p, b1p, w2p, b2p)

    return out_padded[:B, :CLASSES]


def init_params(key):
    """Deterministic PyTorch-style init: U(-1/sqrt(fan_in), +1/sqrt(fan_in))."""
    dims = [(IN_DIM, H0), (H0, H1), (H1, CLASSES)]
    params = []
    for (fan_in, fan_out) in dims:
        key, kw, kb = jax.random.split(key, 3)
        bound = 1.0 / (fan_in ** 0.5)
        w = jax.random.uniform(kw, (fan_in, fan_out), jnp.float32, -bound, bound)
        b = jax.random.uniform(kb, (1, fan_out), jnp.float32, -bound, bound)
        params += [w, b]
    return tuple(params)


def reference_forward(x_nchw, params):
    """Pure-JAX reference mirroring the kernel's bf16-input / f32-accum math."""
    w0, b0, w1, b1, w2, b2 = params
    x = x_nchw.reshape(x_nchw.shape[0], IN_DIM).astype(jnp.bfloat16)
    h = jnp.dot(x, w0.astype(jnp.bfloat16), preferred_element_type=jnp.float32) + b0
    h = jnp.maximum(h, 0.0)
    h = jnp.dot(h.astype(jnp.bfloat16), w1.astype(jnp.bfloat16),
                preferred_element_type=jnp.float32) + b1
    h = jnp.maximum(h, 0.0)
    logits = jnp.dot(h.astype(jnp.bfloat16), w2.astype(jnp.bfloat16),
                     preferred_element_type=jnp.float32) + b2
    return jax.nn.log_softmax(logits, axis=1)


if __name__ == "__main__":
    key = jax.random.PRNGKey(0)
    key, kx = jax.random.split(key)

    B = 8
    x = jax.random.normal(kx, (B, 1, 28, 28), jnp.float32)   # NCHW, like PyTorch
    params = init_params(key)

    out = net_forward(x, params)
    out = jax.block_until_ready(out)

    ref = reference_forward(x, params)
    assert out.shape == (B, CLASSES)
    assert jnp.allclose(out, ref, atol=2e-3, rtol=2e-3), "mismatch vs reference"
    # log-probabilities should sum (in prob space) to ~1
    assert jnp.allclose(jnp.sum(jnp.exp(out), axis=1), 1.0, atol=1e-3)

    print("KERNEL_OK")
</pallas_src>

<mosaic_0001>
module attributes {stable_mosaic.version = 11 : i64} {
  func.func @mlp_kernel(%arg0: i32, %arg1: memref<256x784xbf16, #tpu.memory_space<vmem>>, %arg2: memref<784x128xbf16, #tpu.memory_space<vmem>>, %arg3: memref<1x128xf32, #tpu.memory_space<vmem>>, %arg4: memref<128x128xbf16, #tpu.memory_space<vmem>>, %arg5: memref<1x128xf32, #tpu.memory_space<vmem>>, %arg6: memref<128x128xbf16, #tpu.memory_space<vmem>>, %arg7: memref<1x128xf32, #tpu.memory_space<vmem>>, %arg8: memref<256x128xf32, #tpu.memory_space<vmem>>) attributes {dimension_semantics = [#tpu.dimension_semantics<parallel>], iteration_bounds = array<i64: 1>, scalar_prefetch = 0 : i64, scratch_operands = 0 : i64, tpu.core_type = #tpu.core_type<tc>, window_params = [{transform_indices = @transform_0, window_bounds = array<i64: 256, 784>}, {pipeline_mode = #tpu.pipeline_mode<synchronous>, transform_indices = @transform_1, window_bounds = array<i64: 784, 128>}, {pipeline_mode = #tpu.pipeline_mode<synchronous>, transform_indices = @transform_2, window_bounds = array<i64: 1, 128>}, {pipeline_mode = #tpu.pipeline_mode<synchronous>, transform_indices = @transform_3, window_bounds = array<i64: 128, 128>}, {pipeline_mode = #tpu.pipeline_mode<synchronous>, transform_indices = @transform_4, window_bounds = array<i64: 1, 128>}, {pipeline_mode = #tpu.pipeline_mode<synchronous>, transform_indices = @transform_5, window_bounds = array<i64: 128, 128>}, {pipeline_mode = #tpu.pipeline_mode<synchronous>, transform_indices = @transform_6, window_bounds = array<i64: 1, 128>}, {transform_indices = @transform_7, window_bounds = array<i64: 256, 128>}]} {
    %c0 = arith.constant 0 : index
    %c0_0 = arith.constant 0 : index
    %0 = vector.load %arg1[%c0, %c0_0] : memref<256x784xbf16, #tpu.memory_space<vmem>>, vector<256x784xbf16>
    %c0_1 = arith.constant 0 : index
    %c0_2 = arith.constant 0 : index
    %1 = vector.load %arg2[%c0_1, %c0_2] : memref<784x128xbf16, #tpu.memory_space<vmem>>, vector<784x128xbf16>
    %cst = arith.constant dense<0.000000e+00> : vector<256x128xf32>
    %2 = tpu.matmul %0, %1, %cst {dimension_numbers = #tpu.dot_dimension_numbers<[1], [0], [0], [1], [0, 0, 1, 1], [], []>} : vector<256x784xbf16>, vector<784x128xbf16>, vector<256x128xf32> -> vector<256x128xf32>
    %c0_3 = arith.constant 0 : index
    %c0_4 = arith.constant 0 : index
    %3 = vector.load %arg3[%c0_3, %c0_4] : memref<1x128xf32, #tpu.memory_space<vmem>>, vector<1x128xf32>
    %4 = vector.broadcast %3 : vector<1x128xf32> to vector<256x128xf32>
    %5 = arith.addf %2, %4 : vector<256x128xf32>
    %cst_5 = arith.constant 0.000000e+00 : f32
    %6 = vector.broadcast %cst_5 : f32 to vector<256x128xf32>
    %7 = arith.maximumf %5, %6 : vector<256x128xf32>
    %8 = arith.truncf %7 : vector<256x128xf32> to vector<256x128xbf16>
    %c0_6 = arith.constant 0 : index
    %c0_7 = arith.constant 0 : index
    %9 = vector.load %arg4[%c0_6, %c0_7] : memref<128x128xbf16, #tpu.memory_space<vmem>>, vector<128x128xbf16>
    %cst_8 = arith.constant dense<0.000000e+00> : vector<256x128xf32>
    %10 = tpu.matmul %8, %9, %cst_8 {dimension_numbers = #tpu.dot_dimension_numbers<[1], [0], [0], [1], [0, 0, 1, 1], [], []>} : vector<256x128xbf16>, vector<128x128xbf16>, vector<256x128xf32> -> vector<256x128xf32>
    %c0_9 = arith.constant 0 : index
    %c0_10 = arith.constant 0 : index
    %11 = vector.load %arg5[%c0_9, %c0_10] : memref<1x128xf32, #tpu.memory_space<vmem>>, vector<1x128xf32>
    %12 = vector.broadcast %11 : vector<1x128xf32> to vector<256x128xf32>
    %13 = arith.addf %10, %12 : vector<256x128xf32>
    %cst_11 = arith.constant 0.000000e+00 : f32
    %14 = vector.broadcast %cst_11 : f32 to vector<256x128xf32>
    %15 = arith.maximumf %13, %14 : vector<256x128xf32>
    %16 = arith.truncf %15 : vector<256x128xf32> to vector<256x128xbf16>
    %c0_12 = arith.constant 0 : index
    %c0_13 = arith.constant 0 : index
    %17 = vector.load %arg6[%c0_12, %c0_13] : memref<128x128xbf16, #tpu.memory_space<vmem>>, vector<128x128xbf16>
    %cst_14 = arith.constant dense<0.000000e+00> : vector<256x128xf32>
    %18 = tpu.matmul %16, %17, %cst_14 {dimension_numbers = #tpu.dot_dimension_numbers<[1], [0], [0], [1], [0, 0, 1, 1], [], []>} : vector<256x128xbf16>, vector<128x128xbf16>, vector<256x128xf32> -> vector<256x128xf32>
    %c0_15 = arith.constant 0 : index
    %c0_16 = arith.constant 0 : index
    %19 = vector.load %arg7[%c0_15, %c0_16] : memref<1x128xf32, #tpu.memory_space<vmem>>, vector<1x128xf32>
    %20 = vector.broadcast %19 : vector<1x128xf32> to vector<256x128xf32>
    %21 = arith.addf %18, %20 : vector<256x128xf32>
    %cst_17 = arith.constant dense<0xFF800000> : vector<256xf32>
    %22 = vector.multi_reduction <maximumf>, %21, %cst_17 [1] : vector<256x128xf32> to vector<256xf32>
    %23 = vector.shape_cast %22 : vector<256xf32> to vector<256x1xf32>
    %24 = vector.broadcast %23 : vector<256x1xf32> to vector<256x128xf32>
    %25 = arith.subf %21, %24 : vector<256x128xf32>
    %26 = math.exp %25 : vector<256x128xf32>
    %cst_18 = arith.constant dense<0.000000e+00> : vector<256xf32>
    %27 = vector.multi_reduction <add>, %26, %cst_18 [1] : vector<256x128xf32> to vector<256xf32>
    %28 = vector.shape_cast %27 : vector<256xf32> to vector<256x1xf32>
    %29 = math.log %28 : vector<256x1xf32>
    %30 = vector.broadcast %29 : vector<256x1xf32> to vector<256x128xf32>
    %31 = arith.subf %25, %30 : vector<256x128xf32>
    %c0_19 = arith.constant 0 : index
    %c0_20 = arith.constant 0 : index
    %32 = vector.load %arg8[%c0_19, %c0_20] : memref<256x128xf32, #tpu.memory_space<vmem>>, vector<256x128xf32>
    tpu.vector_store %arg8[%c0_19, %c0_20], %31 {strides = array<i32>} : memref<256x128xf32, #tpu.memory_space<vmem>>, vector<256x128xf32>,
    return
  }
  func.func @transform_0(%arg0: i32) -> (i32, i32) {
    %c0_i32 = arith.constant 0 : i32
    %c0_i32_0 = arith.constant 0 : i32
    return %arg0, %c0_i32 : i32, i32
  }
  func.func @transform_1(%arg0: i32) -> (i32, i32) {
    %c0_i32 = arith.constant 0 : i32
    %c0_i32_0 = arith.constant 0 : i32
    %c0_i32_1 = arith.constant 0 : i32
    return %c0_i32, %c0_i32_0 : i32, i32
  }
  func.func @transform_2(%arg0: i32) -> (i32, i32) {
    %c0_i32 = arith.constant 0 : i32
    %c0_i32_0 = arith.constant 0 : i32
    %c0_i32_1 = arith.constant 0 : i32
    return %c0_i32, %c0_i32_0 : i32, i32
  }
  func.func @transform_3(%arg0: i32) -> (i32, i32) {
    %c0_i32 = arith.constant 0 : i32
    %c0_i32_0 = arith.constant 0 : i32
    %c0_i32_1 = arith.constant 0 : i32
    return %c0_i32, %c0_i32_0 : i32, i32
  }
  func.func @transform_4(%arg0: i32) -> (i32, i32) {
    %c0_i32 = arith.constant 0 : i32
    %c0_i32_0 = arith.constant 0 : i32
    %c0_i32_1 = arith.constant 0 : i32
    return %c0_i32, %c0_i32_0 : i32, i32
  }
  func.func @transform_5(%arg0: i32) -> (i32, i32) {
    %c0_i32 = arith.constant 0 : i32
    %c0_i32_0 = arith.constant 0 : i32
    %c0_i32_1 = arith.constant 0 : i32
    return %c0_i32, %c0_i32_0 : i32, i32
  }
  func.func @transform_6(%arg0: i32) -> (i32, i32) {
    %c0_i32 = arith.constant 0 : i32
    %c0_i32_0 = arith.constant 0 : i32
    %c0_i32_1 = arith.constant 0 : i32
    return %c0_i32, %c0_i32_0 : i32, i32
  }
  func.func @transform_7(%arg0: i32) -> (i32, i32) {
    %c0_i32 = arith.constant 0 : i32
    %c0_i32_0 = arith.constant 0 : i32
    return %arg0, %c0_i32 : i32, i32
  }
}

</mosaic_0001>

<llo_original>
// kernel: tpu_custom_call.1
$region0: #{tpu_custom_call.1}
  #allocation0 [shape = 'u32[]', space=smem, size = 0x4, offset = 0x4, fixed_abs, tag = 'smem constant byte address 0x4 - core index']
  #allocation1 [shape = 'u32[144,128]{1,0:T(1,128)}', space=vmem, size = 0x12000, scoped, tag = 'internal scratch']
  %s0 = inlined_call_operand.vmem [shape: bf16[256,784], index: 0, kind: input, shape index: {}]
  %s1 = inlined_call_operand.vmem [shape: bf16[784,128], index: 1, kind: input, shape index: {}]
  %s2 = inlined_call_operand.vmem [shape: f32[1,128], index: 2, kind: input, shape index: {}]
  %s3 = inlined_call_operand.vmem [shape: bf16[128,128], index: 3, kind: input, shape index: {}]
  %s4 = inlined_call_operand.vmem [shape: f32[1,128], index: 4, kind: input, shape index: {}]
  %s5 = inlined_call_operand.vmem [shape: bf16[128,128], index: 5, kind: input, shape index: {}]
  %s6 = inlined_call_operand.vmem [shape: f32[1,128], index: 6, kind: input, shape index: {}]
  %s7 = inlined_call_operand.hbm [shape: f32[256,128], index: 7, kind: output, shape index: {}]
  %s8 = sld [smem:[#allocation0]]
  $region38: #{tpu_custom_call.1} parent=0
    _
  %s10 = ssub.s32 1, %s8
  %s11 = scalar_select 0, %s10, %s8
  $region1: #{tpu_custom_call.1} parent=0
    #allocation2 [shape = 'u8[131072]{0}', space=vmem, size = 0x20000, scoped, tag = 'output window, operand 0, single buffered']
    #allocation3 [shape = 's32[1]{0}', space=sflag, size = 0x4, scoped, tag = 'scoped memory for tpu_custom_call.1']
    %12 = vsyncpa [#allocation3], 0
    // Predicated region
    $region2: #{tpu_custom_call.1} parent=1 // pred_check
      _
    $region3: #{tpu_custom_call.1} parent=1 // pred_check_branch
      %14 = sbr.rel (0) target = $region5
    $region4: #{tpu_custom_call.1} parent=1 // pred_region
      _
    $region5: #{tpu_custom_call.1} parent=1 // pred_fallthru
      _
    // Predicated region
    $region6: #{tpu_custom_call.1} parent=1 // pred_check
      _
    $region7: #{tpu_custom_call.1} parent=1 // pred_check_branch
      %16 = sbr.rel (0) target = $region9
    $region8: #{tpu_custom_call.1} parent=1 // pred_region
      _
    $region9: #{tpu_custom_call.1} parent=1 // pred_fallthru
      _
    // Predicated region
    $region10: #{tpu_custom_call.1} parent=1 // pred_check
      _
    $region11: #{tpu_custom_call.1} parent=1 // pred_check_branch
      %18 = sbr.rel (0) target = $region13
    $region12: #{tpu_custom_call.1} parent=1 // pred_region
      _
    $region13: #{tpu_custom_call.1} parent=1 // pred_fallthru
      _
    // Predicated region
    $region14: #{tpu_custom_call.1} parent=1 // pred_check
      _
    $region15: #{tpu_custom_call.1} parent=1 // pred_check_branch
      %20 = sbr.rel (0) target = $region17
    $region16: #{tpu_custom_call.1} parent=1 // pred_region
      _
    $region17: #{tpu_custom_call.1} parent=1 // pred_fallthru
      _
    // Predicated region
    $region18: #{tpu_custom_call.1} parent=1 // pred_check
      _
    $region19: #{tpu_custom_call.1} parent=1 // pred_check_branch
      %22 = sbr.rel (0) target = $region21
    $region20: #{tpu_custom_call.1} parent=1 // pred_region
      _
    $region21: #{tpu_custom_call.1} parent=1 // pred_fallthru
      _
    // Predicated region
    $region22: #{tpu_custom_call.1} parent=1 // pred_check
      _
    $region23: #{tpu_custom_call.1} parent=1 // pred_check_branch
      %24 = sbr.rel (0) target = $region25
    $region24: #{tpu_custom_call.1} parent=1 // pred_region
      _
    $region25: #{tpu_custom_call.1} parent=1 // pred_fallthru
      _
    // Predicated region
    $region26: #{tpu_custom_call.1} parent=1 // pred_check
      _
    $region27: #{tpu_custom_call.1} parent=1 // pred_check_branch
      %26 = sbr.rel (0) target = $region29
    $region28: #{tpu_custom_call.1} parent=1 // pred_region
      _
    $region29: #{tpu_custom_call.1} parent=1 // pred_fallthru
      _
    %v28 = vld [vmem:[%s0] sm:$0xff]
    %v29 = vld [vmem:[%s0 + $0x8] sm:$0xff]
    %v30 = vld [vmem:[%s0 + $0x10] sm:$0xff]
    %v31 = vld [vmem:[%s0 + $0x18] sm:$0xf]
    %v32 = vld [vmem:[%s0 + $0x1c] sm:$0xff]
    %v33 = vld [vmem:[%s0 + $0x24] sm:$0xff]
    %v34 = vld [vmem:[%s0 + $0x2c] sm:$0xff]
    %v35 = vld [vmem:[%s0 + $0x34] sm:$0xf]
    %v36 = vld [vmem:[%s0 + $0x38] sm:$0xff]
    %v37 = vld [vmem:[%s0 + $0x40] sm:$0xff]
    %v38 = vld [vmem:[%s0 + $0x48] sm:$0xff]
    %v39 = vld [vmem:[%s0 + $0x50] sm:$0xf]
    %v40 = vld [vmem:[%s0 + $0x54] sm:$0xff]
    %v41 = vld [vmem:[%s0 + $0x5c] sm:$0xff]
    %v42 = vld [vmem:[%s0 + $0x64] sm:$0xff]
    %v43 = vld [vmem:[%s0 + $0x6c] sm:$0xf]
    %v44 = vld [vmem:[%s0 + $0x70] sm:$0xff]
    %v45 = vld [vmem:[%s0 + $0x78] sm:$0xff]
    %v46 = vld [vmem:[%s0 + $0x80] sm:$0xff]
    %v47 = vld [vmem:[%s0 + $0x88] sm:$0xf]
    %v48 = vld [vmem:[%s0 + $0x8c] sm:$0xff]
    %v49 = vld [vmem:[%s0 + $0x94] sm:$0xff]
    %v50 = vld [vmem:[%s0 + $0x9c] sm:$0xff]
    %v51 = vld [vmem:[%s0 + $0xa4] sm:$0xf]
    %v52 = vld [vmem:[%s0 + $0xa8] sm:$0xff]
    %v53 = vld [vmem:[%s0 + $0xb0] sm:$0xff]
    %v54 = vld [vmem:[%s0 + $0xb8] sm:$0xff]
    %v55 = vld [vmem:[%s0 + $0xc0] sm:$0xf]
    %v56 = vld [vmem:[%s0 + $0xc4] sm:$0xff]
    %v57 = vld [vmem:[%s0 + $0xcc] sm:$0xff]
    %v58 = vld [vmem:[%s0 + $0xd4] sm:$0xff]
    %v59 = vld [vmem:[%s0 + $0xdc] sm:$0xf]
    %v60 = vld [vmem:[%s0 + $0xe0] sm:$0xff]
    %v61 = vld [vmem:[%s0 + $0xe8] sm:$0xff]
    %v62 = vld [vmem:[%s0 + $0xf0] sm:$0xff]
    %v63 = vld [vmem:[%s0 + $0xf8] sm:$0xf]
    %v64 = vld [vmem:[%s0 + $0xfc] sm:$0xff]
    %v65 = vld [vmem:[%s0 + $0x104] sm:$0xff]
    %v66 = vld [vmem:[%s0 + $0x10c] sm:$0xff]
    %v67 = vld [vmem:[%s0 + $0x114] sm:$0xf]
    %v68 = vld [vmem:[%s0 + $0x118] sm:$0xff]
    %v69 = vld [vmem:[%s0 + $0x120] sm:$0xff]
    %v70 = vld [vmem:[%s0 + $0x128] sm:$0xff]
    %v71 = vld [vmem:[%s0 + $0x130] sm:$0xf]
    %v72 = vld [vmem:[%s0 + $0x134] sm:$0xff]
    %v73 = vld [vmem:[%s0 + $0x13c] sm:$0xff]
    %v74 = vld [vmem:[%s0 + $0x144] sm:$0xff]
    %v75 = vld [vmem:[%s0 + $0x14c] sm:$0xf]
    %v76 = vld [vmem:[%s0 + $0x150] sm:$0xff]
    %v77 = vld [vmem:[%s0 + $0x158] sm:$0xff]
    %v78 = vld [vmem:[%s0 + $0x160] sm:$0xff]
    %v79 = vld [vmem:[%s0 + $0x168] sm:$0xf]
    %v80 = vld [vmem:[%s0 + $0x16c] sm:$0xff]
    %v81 = vld [vmem:[%s0 + $0x174] sm:$0xff]
    %v82 = vld [vmem:[%s0 + $0x17c] sm:$0xff]
    %v83 = vld [vmem:[%s0 + $0x184] sm:$0xf]
    %v84 = vld [vmem:[%s0 + $0x188] sm:$0xff]
    %v85 = vld [vmem:[%s0 + $0x190] sm:$0xff]
    %v86 = vld [vmem:[%s0 + $0x198] sm:$0xff]
    %v87 = vld [vmem:[%s0 + $0x1a0] sm:$0xf]
    %v88 = vld [vmem:[%s0 + $0x1a4] sm:$0xff]
    %v89 = vld [vmem:[%s0 + $0x1ac] sm:$0xff]
    %v90 = vld [vmem:[%s0 + $0x1b4] sm:$0xff]
    %v91 = vld [vmem:[%s0 + $0x1bc] sm:$0xf]
    %v92 = vld [vmem:[%s0 + $0x1c0] sm:$0xff]
    %v93 = vld [vmem:[%s0 + $0x1c8] sm:$0xff]
    %v94 = vld [vmem:[%s0 + $0x1d0] sm:$0xff]
    %v95 = vld [vmem:[%s0 + $0x1d8] sm:$0xf]
    %v96 = vld [vmem:[%s0 + $0x1dc] sm:$0xff]
    %v97 = vld [vmem:[%s0 + $0x1e4] sm:$0xff]
    %v98 = vld [vmem:[%s0 + $0x1ec] sm:$0xff]
    %v99 = vld [vmem:[%s0 + $0x1f4] sm:$0xf]
    %v100 = vld [vmem:[%s0 + $0x1f8] sm:$0xff]
    %v101 = vld [vmem:[%s0 + $0x200] sm:$0xff]
    %v102 = vld [vmem:[%s0 + $0x208] sm:$0xff]
    %v103 = vld [vmem:[%s0 + $0x210] sm:$0xf]
    %v104 = vld [vmem:[%s0 + $0x214] sm:$0xff]
    %v105 = vld [vmem:[%s0 + $0x21c] sm:$0xff]
    %v106 = vld [vmem:[%s0 + $0x224] sm:$0xff]
    %v107 = vld [vmem:[%s0 + $0x22c] sm:$0xf]
    %v108 = vld [vmem:[%s0 + $0x230] sm:$0xff]
    %v109 = vld [vmem:[%s0 + $0x238] sm:$0xff]
    %v110 = vld [vmem:[%s0 + $0x240] sm:$0xff]
    %v111 = vld [vmem:[%s0 + $0x248] sm:$0xf]
    %v112 = vld [vmem:[%s0 + $0x24c] sm:$0xff]
    %v113 = vld [vmem:[%s0 + $0x254] sm:$0xff]
    %v114 = vld [vmem:[%s0 + $0x25c] sm:$0xff]
    %v115 = vld [vmem:[%s0 + $0x264] sm:$0xf]
    %v116 = vld [vmem:[%s0 + $0x268] sm:$0xff]
    %v117 = vld [vmem:[%s0 + $0x270] sm:$0xff]
    %v118 = vld [vmem:[%s0 + $0x278] sm:$0xff]
    %v119 = vld [vmem:[%s0 + $0x280] sm:$0xf]
    %v120 = vld [vmem:[%s0 + $0x284] sm:$0xff]
    %v121 = vld [vmem:[%s0 + $0x28c] sm:$0xff]
    %v122 = vld [vmem:[%s0 + $0x294] sm:$0xff]
    %v123 = vld [vmem:[%s0 + $0x29c] sm:$0xf]
    %v124 = vld [vmem:[%s0 + $0x2a0] sm:$0xff]
    %v125 = vld [vmem:[%s0 + $0x2a8] sm:$0xff]
    %v126 = vld [vmem:[%s0 + $0x2b0] sm:$0xff]
    %v127 = vld [vmem:[%s0 + $0x2b8] sm:$0xf]
    %v128 = vld [vmem:[%s0 + $0x2bc] sm:$0xff]
    %v129 = vld [vmem:[%s0 + $0x2c4] sm:$0xff]
    %v130 = vld [vmem:[%s0 + $0x2cc] sm:$0xff]
    %v131 = vld [vmem:[%s0 + $0x2d4] sm:$0xf]
    %v132 = vld [vmem:[%s0 + $0x2d8] sm:$0xff]
    %v133 = vld [vmem:[%s0 + $0x2e0] sm:$0xff]
    %v134 = vld [vmem:[%s0 + $0x2e8] sm:$0xff]
    %v135 = vld [vmem:[%s0 + $0x2f0] sm:$0xf]
    %v136 = vld [vmem:[%s0 + $0x2f4] sm:$0xff]
    %v137 = vld [vmem:[%s0 + $0x2fc] sm:$0xff]
    %v138 = vld [vmem:[%s0 + $0x304] sm:$0xff]
    %v139 = vld [vmem:[%s0 + $0x30c] sm:$0xf]
    %v140 = vld [vmem:[%s0 + $0x310] sm:$0xff]
    %v141 = vld [vmem:[%s0 + $0x318] sm:$0xff]
    %v142 = vld [vmem:[%s0 + $0x320] sm:$0xff]
    %v143 = vld [vmem:[%s0 + $0x328] sm:$0xf]
    %v144 = vld [vmem:[%s0 + $0x32c] sm:$0xff]
    %v145 = vld [vmem:[%s0 + $0x334] sm:$0xff]
    %v146 = vld [vmem:[%s0 + $0x33c] sm:$0xff]
    %v147 = vld [vmem:[%s0 + $0x344] sm:$0xf]
    %v148 = vld [vmem:[%s0 + $0x348] sm:$0xff]
    %v149 = vld [vmem:[%s0 + $0x350] sm:$0xff]
    %v150 = vld [vmem:[%s0 + $0x358] sm:$0xff]
    %v151 = vld [vmem:[%s0 + $0x360] sm:$0xf]
    %v152 = vld [vmem:[%s0 + $0x364] sm:$0xff]
    %v153 = vld [vmem:[%s0 + $0x36c] sm:$0xff]
    %v154 = vld [vmem:[%s0 + $0x374] sm:$0xff]
    %v155 = vld [vmem:[%s0 + $0x37c] sm:$0xf]
    %v156 = vld [vmem:[%s1] sm:$0xf]
    %v157 = vld [vmem:[%s1 + $0x4] sm:$0xf]
    %v158 = vld [vmem:[%s1 + $0x8] sm:$0xf]
    %v159 = vld [vmem:[%s1 + $0xc] sm:$0xf]
    %v160 = vld [vmem:[%s1 + $0x10] sm:$0xf]
    %v161 = vld [vmem:[%s1 + $0x14] sm:$0xf]
    %v162 = vld [vmem:[%s1 + $0x18] sm:$0xf]
    %v163 = vld [vmem:[%s1 + $0x1c] sm:$0xf]
    %v164 = vld [vmem:[%s1 + $0x20] sm:$0xf]
    %v165 = vld [vmem:[%s1 + $0x24] sm:$0xf]
    %v166 = vld [vmem:[%s1 + $0x28] sm:$0xf]
    %v167 = vld [vmem:[%s1 + $0x2c] sm:$0xf]
    %v168 = vld [vmem:[%s1 + $0x30] sm:$0xf]
    %v169 = vld [vmem:[%s1 + $0x34] sm:$0xf]
    %v170 = vld [vmem:[%s1 + $0x38] sm:$0xf]
    %v171 = vld [vmem:[%s1 + $0x3c] sm:$0xf]
    %v172 = vld [vmem:[%s1 + $0x40] sm:$0xf]
    %v173 = vld [vmem:[%s1 + $0x44] sm:$0xf]
    %v174 = vld [vmem:[%s1 + $0x48] sm:$0xf]
    %v175 = vld [vmem:[%s1 + $0x4c] sm:$0xf]
    %v176 = vld [vmem:[%s1 + $0x50] sm:$0xf]
    %v177 = vld [vmem:[%s1 + $0x54] sm:$0xf]
    %v178 = vld [vmem:[%s1 + $0x58] sm:$0xf]
    %v179 = vld [vmem:[%s1 + $0x5c] sm:$0xf]
    %v180 = vld [vmem:[%s1 + $0x60] sm:$0xf]
    %v181 = vld [vmem:[%s1 + $0x64] sm:$0xf]
    %v182 = vld [vmem:[%s1 + $0x68] sm:$0xf]
    %v183 = vld [vmem:[%s1 + $0x6c] sm:$0xf]
    %v184 = vld [vmem:[%s1 + $0x70] sm:$0xf]
    %v185 = vld [vmem:[%s1 + $0x74] sm:$0xf]
    %v186 = vld [vmem:[%s1 + $0x78] sm:$0xf]
    %v187 = vld [vmem:[%s1 + $0x7c] sm:$0xf]
    %v188 = vld [vmem:[%s1 + $0x80] sm:$0xf]
    %v189 = vld [vmem:[%s1 + $0x84] sm:$0xf]
    %v190 = vld [vmem:[%s1 + $0x88] sm:$0xf]
    %v191 = vld [vmem:[%s1 + $0x8c] sm:$0xf]
    %v192 = vld [vmem:[%s1 + $0x90] sm:$0xf]
    %v193 = vld [vmem:[%s1 + $0x94] sm:$0xf]
    %v194 = vld [vmem:[%s1 + $0x98] sm:$0xf]
    %v195 = vld [vmem:[%s1 + $0x9c] sm:$0xf]
    %v196 = vld [vmem:[%s1 + $0xa0] sm:$0xf]
    %v197 = vld [vmem:[%s1 + $0xa4] sm:$0xf]
    %v198 = vld [vmem:[%s1 + $0xa8] sm:$0xf]
    %v199 = vld [vmem:[%s1 + $0xac] sm:$0xf]
    %v200 = vld [vmem:[%s1 + $0xb0] sm:$0xf]
    %v201 = vld [vmem:[%s1 + $0xb4] sm:$0xf]
    %v202 = vld [vmem:[%s1 + $0xb8] sm:$0xf]
    %v203 = vld [vmem:[%s1 + $0xbc] sm:$0xf]
    %v204 = vld [vmem:[%s1 + $0xc0] sm:$0xf]
    %v205 = vld [vmem:[%s1 + $0xc4] sm:$0xf]
    %v206 = vld [vmem:[%s1 + $0xc8] sm:$0xf]
    %v207 = vld [vmem:[%s1 + $0xcc] sm:$0xf]
    %v208 = vld [vmem:[%s1 + $0xd0] sm:$0xf]
    %v209 = vld [vmem:[%s1 + $0xd4] sm:$0xf]
    %v210 = vld [vmem:[%s1 + $0xd8] sm:$0xf]
    %v211 = vld [vmem:[%s1 + $0xdc] sm:$0xf]
    %v212 = vld [vmem:[%s1 + $0xe0] sm:$0xf]
    %v213 = vld [vmem:[%s1 + $0xe4] sm:$0xf]
    %v214 = vld [vmem:[%s1 + $0xe8] sm:$0xf]
    %v215 = vld [vmem:[%s1 + $0xec] sm:$0xf]
    %v216 = vld [vmem:[%s1 + $0xf0] sm:$0xf]
    %v217 = vld [vmem:[%s1 + $0xf4] sm:$0xf]
    %v218 = vld [vmem:[%s1 + $0xf8] sm:$0xf]
    %v219 = vld [vmem:[%s1 + $0xfc] sm:$0xf]
    %v220 = vld [vmem:[%s1 + $0x100] sm:$0xf]
    %v221 = vld [vmem:[%s1 + $0x104] sm:$0xf]
    %v222 = vld [vmem:[%s1 + $0x108] sm:$0xf]
    %v223 = vld [vmem:[%s1 + $0x10c] sm:$0xf]
    %v224 = vld [vmem:[%s1 + $0x110] sm:$0xf]
    %v225 = vld [vmem:[%s1 + $0x114] sm:$0xf]
    %v226 = vld [vmem:[%s1 + $0x118] sm:$0xf]
    %v227 = vld [vmem:[%s1 + $0x11c] sm:$0xf]
    %v228 = vld [vmem:[%s1 + $0x120] sm:$0xf]
    %v229 = vld [vmem:[%s1 + $0x124] sm:$0xf]
    %v230 = vld [vmem:[%s1 + $0x128] sm:$0xf]
    %v231 = vld [vmem:[%s1 + $0x12c] sm:$0xf]
    %v232 = vld [vmem:[%s1 + $0x130] sm:$0xf]
    %v233 = vld [vmem:[%s1 + $0x134] sm:$0xf]
    %v234 = vld [vmem:[%s1 + $0x138] sm:$0xf]
    %v235 = vld [vmem:[%s1 + $0x13c] sm:$0xf]
    %v236 = vld [vmem:[%s1 + $0x140] sm:$0xf]
    %v237 = vld [vmem:[%s1 + $0x144] sm:$0xf]
    %v238 = vld [vmem:[%s1 + $0x148] sm:$0xf]
    %v239 = vld [vmem:[%s1 + $0x14c] sm:$0xf]
    %v240 = vld [vmem:[%s1 + $0x150] sm:$0xf]
    %v241 = vld [vmem:[%s1 + $0x154] sm:$0xf]
    %v242 = vld [vmem:[%s1 + $0x158] sm:$0xf]
    %v243 = vld [vmem:[%s1 + $0x15c] sm:$0xf]
    %v244 = vld [vmem:[%s1 + $0x160] sm:$0xf]
    %v245 = vld [vmem:[%s1 + $0x164] sm:$0xf]
    %v246 = vld [vmem:[%s1 + $0x168] sm:$0xf]
    %v247 = vld [vmem:[%s1 + $0x16c] sm:$0xf]
    %v248 = vld [vmem:[%s1 + $0x170] sm:$0xf]
    %v249 = vld [vmem:[%s1 + $0x174] sm:$0xf]
    %v250 = vld [vmem:[%s1 + $0x178] sm:$0xf]
    %v251 = vld [vmem:[%s1 + $0x17c] sm:$0xf]
    %v252 = vld [vmem:[%s1 + $0x180] sm:$0xf]
    %v253 = vld [vmem:[%s1 + $0x184] sm:$0xf]
    %v254 = vld [vmem:[%s2] sm:$0x1]
    %v256 = vlaneseq
    %v257 = vshrl.u32 %v256, 7
    %v258 = vsub.s32 0, %v257
    %v259 = vrot.slane %v254, %v258
    %v389 = vunpack.c.l.b16 %v28
    %v390 = vunpack.c.h.b16 %v28
    %v391 = vunpack.c.l.b16 %v29
    %v392 = vunpack.c.h.b16 %v29
    %v393 = vunpack.c.l.b16 %v30
    %v394 = vunpack.c.h.b16 %v30
    %v395 = vunpack.c.l.b16 %v31
    %v396 = vunpack.c.l.b16 %v32
    %v397 = vunpack.c.h.b16 %v32
    %v398 = vunpack.c.l.b16 %v33
    %v399 = vunpack.c.h.b16 %v33
    %v400 = vunpack.c.l.b16 %v34
    %v401 = vunpack.c.h.b16 %v34
    %v402 = vunpack.c.l.b16 %v35
    %v403 = vunpack.c.l.b16 %v36
    %v404 = vunpack.c.h.b16 %v36
    %v405 = vunpack.c.l.b16 %v37
    %v406 = vunpack.c.h.b16 %v37
    %v407 = vunpack.c.l.b16 %v38
    %v408 = vunpack.c.h.b16 %v38
    %v409 = vunpack.c.l.b16 %v39
    %v410 = vunpack.c.l.b16 %v40
    %v411 = vunpack.c.h.b16 %v40
    %v412 = vunpack.c.l.b16 %v41
    %v413 = vunpack.c.h.b16 %v41
    %v414 = vunpack.c.l.b16 %v42
    %v415 = vunpack.c.h.b16 %v42
    %v416 = vunpack.c.l.b16 %v43
    %v417 = vunpack.c.l.b16 %v44
    %v418 = vunpack.c.h.b16 %v44
    %v419 = vunpack.c.l.b16 %v45
    %v420 = vunpack.c.h.b16 %v45
    %v421 = vunpack.c.l.b16 %v46
    %v422 = vunpack.c.h.b16 %v46
    %v423 = vunpack.c.l.b16 %v47
    %v424 = vunpack.c.l.b16 %v48
    %v425 = vunpack.c.h.b16 %v48
    %v426 = vunpack.c.l.b16 %v49
    %v427 = vunpack.c.h.b16 %v49
    %v428 = vunpack.c.l.b16 %v50
    %v429 = vunpack.c.h.b16 %v50
    %v430 = vunpack.c.l.b16 %v51
    %v431 = vunpack.c.l.b16 %v52
    %v432 = vunpack.c.h.b16 %v52
    %v433 = vunpack.c.l.b16 %v53
    %v434 = vunpack.c.h.b16 %v53
    %v435 = vunpack.c.l.b16 %v54
    %v436 = vunpack.c.h.b16 %v54
    %v437 = vunpack.c.l.b16 %v55
    %v438 = vunpack.c.l.b16 %v56
    %v439 = vunpack.c.h.b16 %v56
    %v440 = vunpack.c.l.b16 %v57
    %v441 = vunpack.c.h.b16 %v57
    %v442 = vunpack.c.l.b16 %v58
    %v443 = vunpack.c.h.b16 %v58
    %v444 = vunpack.c.l.b16 %v59
    %v445 = vunpack.c.l.b16 %v60
    %v446 = vunpack.c.h.b16 %v60
    %v447 = vunpack.c.l.b16 %v61
    %v448 = vunpack.c.h.b16 %v61
    %v449 = vunpack.c.l.b16 %v62
    %v450 = vunpack.c.h.b16 %v62
    %v451 = vunpack.c.l.b16 %v63
    %v452 = vunpack.c.l.b16 %v64
    %v453 = vunpack.c.h.b16 %v64
    %v454 = vunpack.c.l.b16 %v65
    %v455 = vunpack.c.h.b16 %v65
    %v456 = vunpack.c.l.b16 %v66
    %v457 = vunpack.c.h.b16 %v66
    %v458 = vunpack.c.l.b16 %v67
    %v459 = vunpack.c.l.b16 %v68
    %v460 = vunpack.c.h.b16 %v68
    %v461 = vunpack.c.l.b16 %v69
    %v462 = vunpack.c.h.b16 %v69
    %v463 = vunpack.c.l.b16 %v70
    %v464 = vunpack.c.h.b16 %v70
    %v465 = vunpack.c.l.b16 %v71
    %v466 = vunpack.c.l.b16 %v72
    %v467 = vunpack.c.h.b16 %v72
    %v468 = vunpack.c.l.b16 %v73
    %v469 = vunpack.c.h.b16 %v73
    %v470 = vunpack.c.l.b16 %v74
    %v471 = vunpack.c.h.b16 %v74
    %v472 = vunpack.c.l.b16 %v75
    %v473 = vunpack.c.l.b16 %v76
    %v474 = vunpack.c.h.b16 %v76
    %v475 = vunpack.c.l.b16 %v77
    %v476 = vunpack.c.h.b16 %v77
    %v477 = vunpack.c.l.b16 %v78
    %v478 = vunpack.c.h.b16 %v78
    %v479 = vunpack.c.l.b16 %v79
    %v480 = vunpack.c.l.b16 %v80
    %v481 = vunpack.c.h.b16 %v80
    %v482 = vunpack.c.l.b16 %v81
    %v483 = vunpack.c.h.b16 %v81
    %v484 = vunpack.c.l.b16 %v82
    %v485 = vunpack.c.h.b16 %v82
    %v486 = vunpack.c.l.b16 %v83
    %v487 = vunpack.c.l.b16 %v84
    %v488 = vunpack.c.h.b16 %v84
    %v489 = vunpack.c.l.b16 %v85
    %v490 = vunpack.c.h.b16 %v85
    %v491 = vunpack.c.l.b16 %v86
    %v492 = vunpack.c.h.b16 %v86
    %v493 = vunpack.c.l.b16 %v87
    %v494 = vunpack.c.l.b16 %v88
    %v495 = vunpack.c.h.b16 %v88
    %v496 = vunpack.c.l.b16 %v89
    %v497 = vunpack.c.h.b16 %v89
    %v498 = vunpack.c.l.b16 %v90
    %v499 = vunpack.c.h.b16 %v90
    %v500 = vunpack.c.l.b16 %v91
    %v501 = vunpack.c.l.b16 %v92
    %v502 = vunpack.c.h.b16 %v92
    %v503 = vunpack.c.l.b16 %v93
    %v504 = vunpack.c.h.b16 %v93
    %v505 = vunpack.c.l.b16 %v94
    %v506 = vunpack.c.h.b16 %v94
    %v507 = vunpack.c.l.b16 %v95
    %v508 = vunpack.c.l.b16 %v96
    %v509 = vunpack.c.h.b16 %v96
    %v510 = vunpack.c.l.b16 %v97
    %v511 = vunpack.c.h.b16 %v97
    %v512 = vunpack.c.l.b16 %v98
    %v513 = vunpack.c.h.b16 %v98
    %v514 = vunpack.c.l.b16 %v99
    %v515 = vunpack.c.l.b16 %v100
    %v516 = vunpack.c.h.b16 %v100
    %v517 = vunpack.c.l.b16 %v101
    %v518 = vunpack.c.h.b16 %v101
    %v519 = vunpack.c.l.b16 %v102
    %v520 = vunpack.c.h.b16 %v102
    %v521 = vunpack.c.l.b16 %v103
    %v522 = vunpack.c.l.b16 %v104
    %v523 = vunpack.c.h.b16 %v104
    %v524 = vunpack.c.l.b16 %v105
    %v525 = vunpack.c.h.b16 %v105
    %v526 = vunpack.c.l.b16 %v106
    %v527 = vunpack.c.h.b16 %v106
    %v528 = vunpack.c.l.b16 %v107
    %v529 = vunpack.c.l.b16 %v108
    %v530 = vunpack.c.h.b16 %v108
    %v531 = vunpack.c.l.b16 %v109
    %v532 = vunpack.c.h.b16 %v109
    %v533 = vunpack.c.l.b16 %v110
    %v534 = vunpack.c.h.b16 %v110
    %v535 = vunpack.c.l.b16 %v111
    %v536 = vunpack.c.l.b16 %v112
    %v537 = vunpack.c.h.b16 %v112
    %v538 = vunpack.c.l.b16 %v113
    %v539 = vunpack.c.h.b16 %v113
    %v540 = vunpack.c.l.b16 %v114
    %v541 = vunpack.c.h.b16 %v114
    %v542 = vunpack.c.l.b16 %v115
    %v543 = vunpack.c.l.b16 %v116
    %v544 = vunpack.c.h.b16 %v116
    %v545 = vunpack.c.l.b16 %v117
    %v546 = vunpack.c.h.b16 %v117
    %v547 = vunpack.c.l.b16 %v118
    %v548 = vunpack.c.h.b16 %v118
    %v549 = vunpack.c.l.b16 %v119
    %v550 = vunpack.c.l.b16 %v120
    %v551 = vunpack.c.h.b16 %v120
    %v552 = vunpack.c.l.b16 %v121
    %v553 = vunpack.c.h.b16 %v121
    %v554 = vunpack.c.l.b16 %v122
    %v555 = vunpack.c.h.b16 %v122
    %v556 = vunpack.c.l.b16 %v123
    %v557 = vunpack.c.l.b16 %v124
    %v558 = vunpack.c.h.b16 %v124
    %v559 = vunpack.c.l.b16 %v125
    %v560 = vunpack.c.h.b16 %v125
    %v561 = vunpack.c.l.b16 %v126
    %v562 = vunpack.c.h.b16 %v126
    %v563 = vunpack.c.l.b16 %v127
    %v564 = vunpack.c.l.b16 %v128
    %v565 = vunpack.c.h.b16 %v128
    %v566 = vunpack.c.l.b16 %v129
    %v567 = vunpack.c.h.b16 %v129
    %v568 = vunpack.c.l.b16 %v130
    %v569 = vunpack.c.h.b16 %v130
    %v570 = vunpack.c.l.b16 %v131
    %v571 = vunpack.c.l.b16 %v132
    %v572 = vunpack.c.h.b16 %v132
    %v573 = vunpack.c.l.b16 %v133
    %v574 = vunpack.c.h.b16 %v133
    %v575 = vunpack.c.l.b16 %v134
    %v576 = vunpack.c.h.b16 %v134
    %v577 = vunpack.c.l.b16 %v135
    %v578 = vunpack.c.l.b16 %v136
    %v579 = vunpack.c.h.b16 %v136
    %v580 = vunpack.c.l.b16 %v137
    %v581 = vunpack.c.h.b16 %v137
    %v582 = vunpack.c.l.b16 %v138
    %v583 = vunpack.c.h.b16 %v138
    %v584 = vunpack.c.l.b16 %v139
    %v585 = vunpack.c.l.b16 %v140
    %v586 = vunpack.c.h.b16 %v140
    %v587 = vunpack.c.l.b16 %v141
    %v588 = vunpack.c.h.b16 %v141
    %v589 = vunpack.c.l.b16 %v142
    %v590 = vunpack.c.h.b16 %v142
    %v591 = vunpack.c.l.b16 %v143
    %v592 = vunpack.c.l.b16 %v144
    %v593 = vunpack.c.h.b16 %v144
    %v594 = vunpack.c.l.b16 %v145
    %v595 = vunpack.c.h.b16 %v145
    %v596 = vunpack.c.l.b16 %v146
    %v597 = vunpack.c.h.b16 %v146
    %v598 = vunpack.c.l.b16 %v147
    %v599 = vunpack.c.l.b16 %v148
    %v600 = vunpack.c.h.b16 %v148
    %v601 = vunpack.c.l.b16 %v149
    %v602 = vunpack.c.h.b16 %v149
    %v603 = vunpack.c.l.b16 %v150
    %v604 = vunpack.c.h.b16 %v150
    %v605 = vunpack.c.l.b16 %v151
    %v606 = vunpack.c.l.b16 %v152
    %v607 = vunpack.c.h.b16 %v152
    %v608 = vunpack.c.l.b16 %v153
    %v609 = vunpack.c.h.b16 %v153
    %v610 = vunpack.c.l.b16 %v154
    %v611 = vunpack.c.h.b16 %v154
    %v612 = vunpack.c.l.b16 %v155
    %v613 = vpack.c.b16 %v396, %v389
    %v614 = vpack.c.b16 %v397, %v390
    %v615 = vpack.c.b16 %v398, %v391
    %v616 = vpack.c.b16 %v399, %v392
    %v617 = vpack.c.b16 %v400, %v393
    %v618 = vpack.c.b16 %v401, %v394
    %v619 = vpack.c.b16 %v402, %v395
    %v620 = vpack.c.b16 %v410, %v403
    %v621 = vpack.c.b16 %v411, %v404
    %v622 = vpack.c.b16 %v412, %v405
    %v623 = vpack.c.b16 %v413, %v406
    %v624 = vpack.c.b16 %v414, %v407
    %v625 = vpack.c.b16 %v415, %v408
    %v626 = vpack.c.b16 %v416, %v409
    %v627 = vpack.c.b16 %v424, %v417
    %v628 = vpack.c.b16 %v425, %v418
    %v629 = vpack.c.b16 %v426, %v419
    %v630 = vpack.c.b16 %v427, %v420
    %v631 = vpack.c.b16 %v428, %v421
    %v632 = vpack.c.b16 %v429, %v422
    %v633 = vpack.c.b16 %v430, %v423
    %v634 = vpack.c.b16 %v438, %v431
    %v635 = vpack.c.b16 %v439, %v432
    %v636 = vpack.c.b16 %v440, %v433
    %v637 = vpack.c.b16 %v441, %v434
    %v638 = vpack.c.b16 %v442, %v435
    %v639 = vpack.c.b16 %v443, %v436
    %v640 = vpack.c.b16 %v444, %v437
    %v641 = vpack.c.b16 %v452, %v445
    %v642 = vpack.c.b16 %v453, %v446
    %v643 = vpack.c.b16 %v454, %v447
    %v644 = vpack.c.b16 %v455, %v448
    %v645 = vpack.c.b16 %v456, %v449
    %v646 = vpack.c.b16 %v457, %v450
    %v647 = vpack.c.b16 %v458, %v451
    %v648 = vpack.c.b16 %v466, %v459
    %v649 = vpack.c.b16 %v467, %v460
    %v650 = vpack.c.b16 %v468, %v461
    %v651 = vpack.c.b16 %v469, %v462
    %v652 = vpack.c.b16 %v470, %v463
    %v653 = vpack.c.b16 %v471, %v464
    %v654 = vpack.c.b16 %v472, %v465
    %v655 = vpack.c.b16 %v480, %v473
    %v656 = vpack.c.b16 %v481, %v474
    %v657 = vpack.c.b16 %v482, %v475
    %v658 = vpack.c.b16 %v483, %v476
    %v659 = vpack.c.b16 %v484, %v477
    %v660 = vpack.c.b16 %v485, %v478
    %v661 = vpack.c.b16 %v486, %v479
    %v662 = vpack.c.b16 %v494, %v487
    %v663 = vpack.c.b16 %v495, %v488
    %v664 = vpack.c.b16 %v496, %v489
    %v665 = vpack.c.b16 %v497, %v490
    %v666 = vpack.c.b16 %v498, %v491
    %v667 = vpack.c.b16 %v499, %v492
    %v668 = vpack.c.b16 %v500, %v493
    %v669 = vpack.c.b16 %v508, %v501
    %v670 = vpack.c.b16 %v509, %v502
    %v671 = vpack.c.b16 %v510, %v503
    %v672 = vpack.c.b16 %v511, %v504
    %v673 = vpack.c.b16 %v512, %v505
    %v674 = vpack.c.b16 %v513, %v506
    %v675 = vpack.c.b16 %v514, %v507
    %v676 = vpack.c.b16 %v522, %v515
    %v677 = vpack.c.b16 %v523, %v516
    %v678 = vpack.c.b16 %v524, %v517
    %v679 = vpack.c.b16 %v525, %v518
    %v680 = vpack.c.b16 %v526, %v519
    %v681 = vpack.c.b16 %v527, %v520
    %v682 = vpack.c.b16 %v528, %v521
    %v683 = vpack.c.b16 %v536, %v529
    %v684 = vpack.c.b16 %v537, %v530
    %v685 = vpack.c.b16 %v538, %v531
    %v686 = vpack.c.b16 %v539, %v532
    %v687 = vpack.c.b16 %v540, %v533
    %v688 = vpack.c.b16 %v541, %v534
    %v689 = vpack.c.b16 %v542, %v535
    %v690 = vpack.c.b16 %v550, %v543
    %v691 = vpack.c.b16 %v551, %v544
    %v692 = vpack.c.b16 %v552, %v545
    %v693 = vpack.c.b16 %v553, %v546
    %v694 = vpack.c.b16 %v554, %v547
    %v695 = vpack.c.b16 %v555, %v548
    %v696 = vpack.c.b16 %v556, %v549
    %v697 = vpack.c.b16 %v564, %v557
    %v698 = vpack.c.b16 %v565, %v558
    %v699 = vpack.c.b16 %v566, %v559
    %v700 = vpack.c.b16 %v567, %v560
    %v701 = vpack.c.b16 %v568, %v561
    %v702 = vpack.c.b16 %v569, %v562
    %v703 = vpack.c.b16 %v570, %v563
    %v704 = vpack.c.b16 %v578, %v571
    %v705 = vpack.c.b16 %v579, %v572
    %v706 = vpack.c.b16 %v580, %v573
    %v707 = vpack.c.b16 %v581, %v574
    %v708 = vpack.c.b16 %v582, %v575
    %v709 = vpack.c.b16 %v583, %v576
    %v710 = vpack.c.b16 %v584, %v577
    %v711 = vpack.c.b16 %v592, %v585
    %v712 = vpack.c.b16 %v593, %v586
    %v713 = vpack.c.b16 %v594, %v587
    %v714 = vpack.c.b16 %v595, %v588
    %v715 = vpack.c.b16 %v596, %v589
    %v716 = vpack.c.b16 %v597, %v590
    %v717 = vpack.c.b16 %v598, %v591
    %v718 = vpack.c.b16 %v606, %v599
    %v719 = vpack.c.b16 %v607, %v600
    %v720 = vpack.c.b16 %v608, %v601
    %v721 = vpack.c.b16 %v609, %v602
    %v722 = vpack.c.b16 %v610, %v603
    %v723 = vpack.c.b16 %v611, %v604
    %v724 = vpack.c.b16 %v612, %v605
    %v919 = vunpack.c.l.b16 %v156
    %v920 = vunpack.c.l.b16 %v157
    %v921 = vunpack.c.l.b16 %v158
    %v922 = vunpack.c.l.b16 %v159
    %v923 = vunpack.c.l.b16 %v160
    %v924 = vunpack.c.l.b16 %v161
    %v925 = vunpack.c.l.b16 %v162
    %v926 = vunpack.c.l.b16 %v163
    %v927 = vunpack.c.l.b16 %v164
    %v928 = vunpack.c.l.b16 %v165
    %v929 = vunpack.c.l.b16 %v166
    %v930 = vunpack.c.l.b16 %v167
    %v931 = vunpack.c.l.b16 %v168
    %v932 = vunpack.c.l.b16 %v169
    %v933 = vunpack.c.l.b16 %v170
    %v934 = vunpack.c.l.b16 %v171
    %v935 = vunpack.c.l.b16 %v172
    %v936 = vunpack.c.l.b16 %v173
    %v937 = vunpack.c.l.b16 %v174
    %v938 = vunpack.c.l.b16 %v175
    %v939 = vunpack.c.l.b16 %v176
    %v940 = vunpack.c.l.b16 %v177
    %v941 = vunpack.c.l.b16 %v178
    %v942 = vunpack.c.l.b16 %v179
    %v943 = vunpack.c.l.b16 %v180
    %v944 = vunpack.c.l.b16 %v181
    %v945 = vunpack.c.l.b16 %v182
    %v946 = vunpack.c.l.b16 %v183
    %v947 = vunpack.c.l.b16 %v184
    %v948 = vunpack.c.l.b16 %v185
    %v949 = vunpack.c.l.b16 %v186
    %v950 = vunpack.c.l.b16 %v187
    %v951 = vunpack.c.l.b16 %v188
    %v952 = vunpack.c.l.b16 %v189
    %v953 = vunpack.c.l.b16 %v190
    %v954 = vunpack.c.l.b16 %v191
    %v955 = vunpack.c.l.b16 %v192
    %v956 = vunpack.c.l.b16 %v193
    %v957 = vunpack.c.l.b16 %v194
    %v958 = vunpack.c.l.b16 %v195
    %v959 = vunpack.c.l.b16 %v196
    %v960 = vunpack.c.l.b16 %v197
    %v961 = vunpack.c.l.b16 %v198
    %v962 = vunpack.c.l.b16 %v199
    %v963 = vunpack.c.l.b16 %v200
    %v964 = vunpack.c.l.b16 %v201
    %v965 = vunpack.c.l.b16 %v202
    %v966 = vunpack.c.l.b16 %v203
    %v967 = vunpack.c.l.b16 %v204
    %v968 = vunpack.c.l.b16 %v205
    %v969 = vunpack.c.l.b16 %v206
    %v970 = vunpack.c.l.b16 %v207
    %v971 = vunpack.c.l.b16 %v208
    %v972 = vunpack.c.l.b16 %v209
    %v973 = vunpack.c.l.b16 %v210
    %v974 = vunpack.c.l.b16 %v211
    %v975 = vunpack.c.l.b16 %v212
    %v976 = vunpack.c.l.b16 %v213
    %v977 = vunpack.c.l.b16 %v214
    %v978 = vunpack.c.l.b16 %v215
    %v979 = vunpack.c.l.b16 %v216
    %v980 = vunpack.c.l.b16 %v217
    %v981 = vunpack.c.l.b16 %v218
    %v982 = vunpack.c.l.b16 %v219
    %v983 = vunpack.c.l.b16 %v220
    %v984 = vunpack.c.l.b16 %v221
    %v985 = vunpack.c.l.b16 %v222
    %v986 = vunpack.c.l.b16 %v223
    %v987 = vunpack.c.l.b16 %v224
    %v988 = vunpack.c.l.b16 %v225
    %v989 = vunpack.c.l.b16 %v226
    %v990 = vunpack.c.l.b16 %v227
    %v991 = vunpack.c.l.b16 %v228
    %v992 = vunpack.c.l.b16 %v229
    %v993 = vunpack.c.l.b16 %v230
    %v994 = vunpack.c.l.b16 %v231
    %v995 = vunpack.c.l.b16 %v232
    %v996 = vunpack.c.l.b16 %v233
    %v997 = vunpack.c.l.b16 %v234
    %v998 = vunpack.c.l.b16 %v235
    %v999 = vunpack.c.l.b16 %v236
    %v1000 = vunpack.c.l.b16 %v237
    %v1001 = vunpack.c.l.b16 %v238
    %v1002 = vunpack.c.l.b16 %v239
    %v1003 = vunpack.c.l.b16 %v240
    %v1004 = vunpack.c.l.b16 %v241
    %v1005 = vunpack.c.l.b16 %v242
    %v1006 = vunpack.c.l.b16 %v243
    %v1007 = vunpack.c.l.b16 %v244
    %v1008 = vunpack.c.l.b16 %v245
    %v1009 = vunpack.c.l.b16 %v246
    %v1010 = vunpack.c.l.b16 %v247
    %v1011 = vunpack.c.l.b16 %v248
    %v1012 = vunpack.c.l.b16 %v249
    %v1013 = vunpack.c.l.b16 %v250
    %v1014 = vunpack.c.l.b16 %v251
    %v1015 = vunpack.c.l.b16 %v252
    %v1016 = vunpack.c.l.b16 %v253
    %v1017 = vpack.c.b16 %v920, %v919
    %v1018 = vpack.c.b16 %v922, %v921
    %v1019 = vpack.c.b16 %v924, %v923
    %v1020 = vpack.c.b16 %v926, %v925
    %v1021 = vpack.c.b16 %v928, %v927
    %v1022 = vpack.c.b16 %v930, %v929
    %v1023 = vpack.c.b16 %v932, %v931
    %v1024 = vpack.c.b16 %v934, %v933
    %v1025 = vpack.c.b16 %v936, %v935
    %v1026 = vpack.c.b16 %v938, %v937
    %v1027 = vpack.c.b16 %v940, %v939
    %v1028 = vpack.c.b16 %v942, %v941
    %v1029 = vpack.c.b16 %v944, %v943
    %v1030 = vpack.c.b16 %v946, %v945
    %v1031 = vpack.c.b16 %v948, %v947
    %v1032 = vpack.c.b16 %v950, %v949
    %v1033 = vpack.c.b16 %v952, %v951
    %v1034 = vpack.c.b16 %v954, %v953
    %v1035 = vpack.c.b16 %v956, %v955
    %v1036 = vpack.c.b16 %v958, %v957
    %v1037 = vpack.c.b16 %v960, %v959
    %v1038 = vpack.c.b16 %v962, %v961
    %v1039 = vpack.c.b16 %v964, %v963
    %v1040 = vpack.c.b16 %v966, %v965
    %v1041 = vpack.c.b16 %v968, %v967
    %v1042 = vpack.c.b16 %v970, %v969
    %v1043 = vpack.c.b16 %v972, %v971
    %v1044 = vpack.c.b16 %v974, %v973
    %v1045 = vpack.c.b16 %v976, %v975
    %v1046 = vpack.c.b16 %v978, %v977
    %v1047 = vpack.c.b16 %v980, %v979
    %v1048 = vpack.c.b16 %v982, %v981
    %v1049 = vpack.c.b16 %v984, %v983
    %v1050 = vpack.c.b16 %v986, %v985
    %v1051 = vpack.c.b16 %v988, %v987
    %v1052 = vpack.c.b16 %v990, %v989
    %v1053 = vpack.c.b16 %v992, %v991
    %v1054 = vpack.c.b16 %v994, %v993
    %v1055 = vpack.c.b16 %v996, %v995
    %v1056 = vpack.c.b16 %v998, %v997
    %v1057 = vpack.c.b16 %v1000, %v999
    %v1058 = vpack.c.b16 %v1002, %v1001
    %v1059 = vpack.c.b16 %v1004, %v1003
    %v1060 = vpack.c.b16 %v1006, %v1005
    %v1061 = vpack.c.b16 %v1008, %v1007
    %v1062 = vpack.c.b16 %v1010, %v1009
    %v1063 = vpack.c.b16 %v1012, %v1011
    %v1064 = vpack.c.b16 %v1014, %v1013
    %v1065 = vpack.c.b16 %v1016, %v1015
    %vm1115 = vcmask 130048
    %v1117 = vsel %vm1115, %v619, 0
    %v1120 = vsel %vm1115, %v626, 0
    %v1123 = vsel %vm1115, %v633, 0
    %v1126 = vsel %vm1115, %v640, 0
    %v1129 = vsel %vm1115, %v647, 0
    %v1132 = vsel %vm1115, %v654, 0
    %v1135 = vsel %vm1115, %v661, 0
    %v1138 = vsel %vm1115, %v668, 0
    %v1141 = vsel %vm1115, %v675, 0
    %v1144 = vsel %vm1115, %v682, 0
    %v1147 = vsel %vm1115, %v689, 0
    %v1150 = vsel %vm1115, %v696, 0
    %v1153 = vsel %vm1115, %v703, 0
    %v1156 = vsel %vm1115, %v710, 0
    %v1159 = vsel %vm1115, %v717, 0
    %v1162 = vsel %vm1115, %v724, 0
    %1164 = vmatprep.subr.bf16.mxu0 0
    %1165 = vmatpush1.bf16.msra.mxu0 %v1017
    %1166 = vmatprep.subr.bf16.mxu0 0
    %1167 = vmatpush1.bf16.msra.mxu0 %v1018
    %1168 = vmatprep.subr.bf16.mxu0 0
    %1169 = vmatpush1.bf16.msra.mxu0 %v1019
    %1170 = vmatprep.subr.bf16.mxu0 0
    %1171 = vmatpush1.bf16.msra.mxu0 %v1020
    %1172 = vmatprep.subr.bf16.mxu0 0
    %1173 = vmatpush1.bf16.msra.mxu0 %v1021
    %1174 = vmatprep.subr.bf16.mxu0 0
    %1175 = vmatpush1.bf16.msra.mxu0 %v1022
    %1176 = vmatprep.subr.bf16.mxu0 0
    %1177 = vmatpush1.bf16.msra.mxu0 %v1023
    %1178 = vmatprep.subr.bf16.mxu0 0
    %1179 = vmatpush1.bf16.msra.mxu0 %v1024
    %1180 = vmatprep.subr.bf16.mxu0 0
    %1181 = vmatpush1.bf16.msra.mxu0 %v1025
    %1182 = vmatprep.subr.bf16.mxu0 0
    %1183 = vmatpush1.bf16.msra.mxu0 %v1026
    %1184 = vmatprep.subr.bf16.mxu0 0
    %1185 = vmatpush1.bf16.msra.mxu0 %v1027
    %1186 = vmatprep.subr.bf16.mxu0 0
    %1187 = vmatpush1.bf16.msra.mxu0 %v1028
    %1188 = vmatprep.subr.bf16.mxu0 0
    %1189 = vmatpush1.bf16.msra.mxu0 %v1029
    %1190 = vmatprep.subr.bf16.mxu0 0
    %1191 = vmatpush1.bf16.msra.mxu0 %v1030
    %1192 = vmatprep.subr.bf16.mxu0 0
    %1193 = vmatpush1.bf16.msra.mxu0 %v1031
    %1194 = vmatprep.subr.bf16.mxu0 0
    %1195 = vmatpush1.bf16.msra.mxu0 %v1032
    %1196 = vmatprep.mubr.bf16.mxu0 %v614
    %1197 = vmatmul.mubr.bf16.gmra.mrb[0].mxu0 %v613
    %v1198 = vpop.f32.mrb[0].mxu0
    %v1199 = vadd.f32 %v259, %v1198
    %v1200 = vpop.f32.mrb[0].mxu0
    %v1201 = vpop.f32.mrb[0].mxu0
    %v1202 = vadd.f32 %v259, %v1201
    %v1203 = vpop.f32.mrb[0].mxu0
    %1204 = vmatprep.mubr.bf16.mxu0 %v621
    %1205 = vmatmul.mubr.bf16.gmra.mrb[0].mxu0 %v620
    %v1206 = vpop.f32.mrb[0].mxu0
    %v1207 = vadd.f32 %v259, %v1206
    %v1208 = vpop.f32.mrb[0].mxu0
    %v1209 = vpop.f32.mrb[0].mxu0
    %v1210 = vadd.f32 %v259, %v1209
    %v1211 = vpop.f32.mrb[0].mxu0
    %1212 = vmatprep.mubr.bf16.mxu0 %v628
    %1213 = vmatmul.mubr.bf16.gmra.mrb[0].mxu0 %v627
    %v1214 = vpop.f32.mrb[0].mxu0
    %v1215 = vadd.f32 %v259, %v1214
    %v1216 = vpop.f32.mrb[0].mxu0
    %v1217 = vpop.f32.mrb[0].mxu0
    %v1218 = vadd.f32 %v259, %v1217
    %v1219 = vpop.f32.mrb[0].mxu0
    %1220 = vmatprep.mubr.bf16.mxu0 %v635
    %1221 = vmatmul.mubr.bf16.gmra.mrb[0].mxu0 %v634
    %v1222 = vpop.f32.mrb[0].mxu0
    %v1223 = vadd.f32 %v259, %v1222
    %v1224 = vpop.f32.mrb[0].mxu0
    %v1225 = vpop.f32.mrb[0].mxu0
    %v1226 = vadd.f32 %v259, %v1225
    %v1227 = vpop.f32.mrb[0].mxu0
    %1228 = vmatprep.mubr.bf16.mxu0 %v642
    %1229 = vmatmul.mubr.bf16.gmra.mrb[0].mxu0 %v641
    %v1230 = vpop.f32.mrb[0].mxu0
    %v1231 = vadd.f32 %v259, %v1230
    %v1232 = vpop.f32.mrb[0].mxu0
    %v1233 = vpop.f32.mrb[0].mxu0
    %v1234 = vadd.f32 %v259, %v1233
    %v1235 = vpop.f32.mrb[0].mxu0
    %1236 = vmatprep.mubr.bf16.mxu0 %v649
    %1237 = vmatmul.mubr.bf16.gmra.mrb[0].mxu0 %v648
    %v1238 = vpop.f32.mrb[0].mxu0
    %v1239 = vadd.f32 %v259, %v1238
    %v1240 = vpop.f32.mrb[0].mxu0
    %v1241 = vpop.f32.mrb[0].mxu0
    %v1242 = vadd.f32 %v259, %v1241
    %v1243 = vpop.f32.mrb[0].mxu0
    %1244 = vmatprep.mubr.bf16.mxu0 %v656
    %1245 = vmatmul.mubr.bf16.gmra.mrb[0].mxu0 %v655
    %v1246 = vpop.f32.mrb[0].mxu0
    %v1247 = vadd.f32 %v259, %v1246
    %v1248 = vpop.f32.mrb[0].mxu0
    %v1249 = vpop.f32.mrb[0].mxu0
    %v1250 = vadd.f32 %v259, %v1249
    %v1251 = vpop.f32.mrb[0].mxu0
    %1252 = vmatprep.mubr.bf16.mxu0 %v663
    %1253 = vmatmul.mubr.bf16.gmra.mrb[0].mxu0 %v662
    %v1254 = vpop.f32.mrb[0].mxu0
    %v1255 = vadd.f32 %v259, %v1254
    %v1256 = vpop.f32.mrb[0].mxu0
    %v1257 = vpop.f32.mrb[0].mxu0
    %v1258 = vadd.f32 %v259, %v1257
    %v1259 = vpop.f32.mrb[0].mxu0
    %1260 = vmatprep.mubr.bf16.mxu0 %v670
    %1261 = vmatmul.mubr.bf16.gmra.mrb[0].mxu0 %v669
    %v1262 = vpop.f32.mrb[0].mxu0
    %v1263 = vadd.f32 %v259, %v1262
    %v1264 = vpop.f32.mrb[0].mxu0
    %v1265 = vpop.f32.mrb[0].mxu0
    %v1266 = vadd.f32 %v259, %v1265
    %v1267 = vpop.f32.mrb[0].mxu0
    %1268 = vmatprep.mubr.bf16.mxu0 %v677
    %1269 = vmatmul.mubr.bf16.gmra.mrb[0].mxu0 %v676
    %v1270 = vpop.f32.mrb[0].mxu0
    %v1271 = vadd.f32 %v259, %v1270
    %v1272 = vpop.f32.mrb[0].mxu0
    %v1273 = vpop.f32.mrb[0].mxu0
    %v1274 = vadd.f32 %v259, %v1273
    %v1275 = vpop.f32.mrb[0].mxu0
    %1276 = vmatprep.mubr.bf16.mxu0 %v684
    %1277 = vmatmul.mubr.bf16.gmra.mrb[0].mxu0 %v683
    %v1278 = vpop.f32.mrb[0].mxu0
    %v1279 = vadd.f32 %v259, %v1278
    %v1280 = vpop.f32.mrb[0].mxu0
    %v1281 = vpop.f32.mrb[0].mxu0
    %v1282 = vadd.f32 %v259, %v1281
    %v1283 = vpop.f32.mrb[0].mxu0
    %1284 = vmatprep.mubr.bf16.mxu0 %v691
    %1285 = vmatmul.mubr.bf16.gmra.mrb[0].mxu0 %v690
    %v1286 = vpop.f32.mrb[0].mxu0
    %v1287 = vadd.f32 %v259, %v1286
    %v1288 = vpop.f32.mrb[0].mxu0
    %v1289 = vpop.f32.mrb[0].mxu0
    %v1290 = vadd.f32 %v259, %v1289
    %v1291 = vpop.f32.mrb[0].mxu0
    %1292 = vmatprep.mubr.bf16.mxu0 %v698
    %1293 = vmatmul.mubr.bf16.gmra.mrb[0].mxu0 %v697
    %v1294 = vpop.f32.mrb[0].mxu0
    %v1295 = vadd.f32 %v259, %v1294
    %v1296 = vpop.f32.mrb[0].mxu0
    %v1297 = vpop.f32.mrb[0].mxu0
    %v1298 = vadd.f32 %v259, %v1297
    %v1299 = vpop.f32.mrb[0].mxu0
    %1300 = vmatprep.mubr.bf16.mxu0 %v705
    %1301 = vmatmul.mubr.bf16.gmra.mrb[0].mxu0 %v704
    %v1302 = vpop.f32.mrb[0].mxu0
    %v1303 = vadd.f32 %v259, %v1302
    %v1304 = vpop.f32.mrb[0].mxu0
    %v1305 = vpop.f32.mrb[0].mxu0
    %v1306 = vadd.f32 %v259, %v1305
    %v1307 = vpop.f32.mrb[0].mxu0
    %1308 = vmatprep.mubr.bf16.mxu0 %v712
    %1309 = vmatmul.mubr.bf16.gmra.mrb[0].mxu0 %v711
    %v1310 = vpop.f32.mrb[0].mxu0
    %v1311 = vadd.f32 %v259, %v1310
    %v1312 = vpop.f32.mrb[0].mxu0
    %v1313 = vpop.f32.mrb[0].mxu0
    %v1314 = vadd.f32 %v259, %v1313
    %v1315 = vpop.f32.mrb[0].mxu0
    %1316 = vmatprep.mubr.bf16.mxu0 %v719
    %1317 = vmatmul.mubr.bf16.gmra.mrb[0].mxu0 %v718
    %v1318 = vpop.f32.mrb[0].mxu0
    %v1319 = vadd.f32 %v259, %v1318
    %v1320 = vpop.f32.mrb[0].mxu0
    %v1321 = vpop.f32.mrb[0].mxu0
    %v1322 = vadd.f32 %v259, %v1321
    %v1323 = vpop.f32.mrb[0].mxu0
    %1324 = vdwg.mxu0
    %1325 = vmatprep.subr.bf16.mxu0 0
    %1326 = vmatpush1.bf16.msra.mxu0 %v1033
    %1327 = vmatprep.subr.bf16.mxu0 0
    %1328 = vmatpush1.bf16.msra.mxu0 %v1034
    %1329 = vmatprep.subr.bf16.mxu0 0
    %1330 = vmatpush1.bf16.msra.mxu0 %v1035
    %1331 = vmatprep.subr.bf16.mxu0 0
    %1332 = vmatpush1.bf16.msra.mxu0 %v1036
    %1333 = vmatprep.subr.bf16.mxu0 0
    %1334 = vmatpush1.bf16.msra.mxu0 %v1037
    %1335 = vmatprep.subr.bf16.mxu0 0
    %1336 = vmatpush1.bf16.msra.mxu0 %v1038
    %1337 = vmatprep.subr.bf16.mxu0 0
    %1338 = vmatpush1.bf16.msra.mxu0 %v1039
    %1339 = vmatprep.subr.bf16.mxu0 0
    %1340 = vmatpush1.bf16.msra.mxu0 %v1040
    %1341 = vmatprep.subr.bf16.mxu0 0
    %1342 = vmatpush1.bf16.msra.mxu0 %v1041
    %1343 = vmatprep.subr.bf16.mxu0 0
    %1344 = vmatpush1.bf16.msra.mxu0 %v1042
    %1345 = vmatprep.subr.bf16.mxu0 0
    %1346 = vmatpush1.bf16.msra.mxu0 %v1043
    %1347 = vmatprep.subr.bf16.mxu0 0
    %1348 = vmatpush1.bf16.msra.mxu0 %v1044
    %1349 = vmatprep.subr.bf16.mxu0 0
    %1350 = vmatpush1.bf16.msra.mxu0 %v1045
    %1351 = vmatprep.subr.bf16.mxu0 0
    %1352 = vmatpush1.bf16.msra.mxu0 %v1046
    %1353 = vmatprep.subr.bf16.mxu0 0
    %1354 = vmatpush1.bf16.msra.mxu0 %v1047
    %1355 = vmatprep.subr.bf16.mxu0 0
    %1356 = vmatpush1.bf16.msra.mxu0 %v1048
    %1357 = vmatprep.mubr.bf16.mxu0 %v616
    %1358 = vmatmul.mubr.bf16.gmra.mrb[0].mxu0 %v615
    %v1359 = vpop.f32.mrb[0].mxu0
    %v1360 = vadd.f32 %v1199, %v1359
    %v1361 = vpop.f32.mrb[0].mxu0
    %v1362 = vpop.f32.mrb[0].mxu0
    %v1363 = vadd.f32 %v1202, %v1362
    %v1364 = vpop.f32.mrb[0].mxu0
    %1365 = vmatprep.mubr.bf16.mxu0 %v623
    %1366 = vmatmul.mubr.bf16.gmra.mrb[0].mxu0 %v622
    %v1367 = vpop.f32.mrb[0].mxu0
    %v1368 = vadd.f32 %v1207, %v1367
    %v1369 = vpop.f32.mrb[0].mxu0
    %v1370 = vpop.f32.mrb[0].mxu0
    %v1371 = vadd.f32 %v1210, %v1370
    %v1372 = vpop.f32.mrb[0].mxu0
    %1373 = vmatprep.mubr.bf16.mxu0 %v630
    %1374 = vmatmul.mubr.bf16.gmra.mrb[0].mxu0 %v629
    %v1375 = vpop.f32.mrb[0].mxu0
    %v1376 = vadd.f32 %v1215, %v1375
    %v1377 = vpop.f32.mrb[0].mxu0
    %v1378 = vpop.f32.mrb[0].mxu0
    %v1379 = vadd.f32 %v1218, %v1378
    %v1380 = vpop.f32.mrb[0].mxu0
    %1381 = vmatprep.mubr.bf16.mxu0 %v637
    %1382 = vmatmul.mubr.bf16.gmra.mrb[0].mxu0 %v636
    %v1383 = vpop.f32.mrb[0].mxu0
    %v1384 = vadd.f32 %v1223, %v1383
    %v1385 = vpop.f32.mrb[0].mxu0
    %v1386 = vpop.f32.mrb[0].mxu0
    %v1387 = vadd.f32 %v1226, %v1386
    %v1388 = vpop.f32.mrb[0].mxu0
    %1389 = vmatprep.mubr.bf16.mxu0 %v644
    %1390 = vmatmul.mubr.bf16.gmra.mrb[0].mxu0 %v643
    %v1391 = vpop.f32.mrb[0].mxu0
    %v1392 = vadd.f32 %v1231, %v1391
    %v1393 = vpop.f32.mrb[0].mxu0
    %v1394 = vpop.f32.mrb[0].mxu0
    %v1395 = vadd.f32 %v1234, %v1394
    %v1396 = vpop.f32.mrb[0].mxu0
    %1397 = vmatprep.mubr.bf16.mxu0 %v651
    %1398 = vmatmul.mubr.bf16.gmra.mrb[0].mxu0 %v650
    %v1399 = vpop.f32.mrb[0].mxu0
    %v1400 = vadd.f32 %v1239, %v1399
    %v1401 = vpop.f32.mrb[0].mxu0
    %v1402 = vpop.f32.mrb[0].mxu0
    %v1403 = vadd.f32 %v1242, %v1402
    %v1404 = vpop.f32.mrb[0].mxu0
    %1405 = vmatprep.mubr.bf16.mxu0 %v658
    %1406 = vmatmul.mubr.bf16.gmra.mrb[0].mxu0 %v657
    %v1407 = vpop.f32.mrb[0].mxu0
    %v1408 = vadd.f32 %v1247, %v1407
    %v1409 = vpop.f32.mrb[0].mxu0
    %v1410 = vpop.f32.mrb[0].mxu0
    %v1411 = vadd.f32 %v1250, %v1410
    %v1412 = vpop.f32.mrb[0].mxu0
    %1413 = vmatprep.mubr.bf16.mxu0 %v665
    %1414 = vmatmul.mubr.bf16.gmra.mrb[0].mxu0 %v664
    %v1415 = vpop.f32.mrb[0].mxu0
    %v1416 = vadd.f32 %v1255, %v1415
    %v1417 = vpop.f32.mrb[0].mxu0
    %v1418 = vpop.f32.mrb[0].mxu0
    %v1419 = vadd.f32 %v1258, %v1418
    %v1420 = vpop.f32.mrb[0].mxu0
    %1421 = vmatprep.mubr.bf16.mxu0 %v672
    %1422 = vmatmul.mubr.bf16.gmra.mrb[0].mxu0 %v671
    %v1423 = vpop.f32.mrb[0].mxu0
    %v1424 = vadd.f32 %v1263, %v1423
    %v1425 = vpop.f32.mrb[0].mxu0
    %v1426 = vpop.f32.mrb[0].mxu0
    %v1427 = vadd.f32 %v1266, %v1426
    %v1428 = vpop.f32.mrb[0].mxu0
    %1429 = vmatprep.mubr.bf16.mxu0 %v679
    %1430 = vmatmul.mubr.bf16.gmra.mrb[0].mxu0 %v678
    %v1431 = vpop.f32.mrb[0].mxu0
    %v1432 = vadd.f32 %v1271, %v1431
    %v1433 = vpop.f32.mrb[0].mxu0
    %v1434 = vpop.f32.mrb[0].mxu0
    %v1435 = vadd.f32 %v1274, %v1434
    %v1436 = vpop.f32.mrb[0].mxu0
    %1437 = vmatprep.mubr.bf16.mxu0 %v686
    %1438 = vmatmul.mubr.bf16.gmra.mrb[0].mxu0 %v685
    %v1439 = vpop.f32.mrb[0].mxu0
    %v1440 = vadd.f32 %v1279, %v1439
    %v1441 = vpop.f32.mrb[0].mxu0
    %v1442 = vpop.f32.mrb[0].mxu0
    %v1443 = vadd.f32 %v1282, %v1442
    %v1444 = vpop.f32.mrb[0].mxu0
    %1445 = vmatprep.mubr.bf16.mxu0 %v693
    %1446 = vmatmul.mubr.bf16.gmra.mrb[0].mxu0 %v692
    %v1447 = vpop.f32.mrb[0].mxu0
    %v1448 = vadd.f32 %v1287, %v1447
    %v1449 = vpop.f32.mrb[0].mxu0
    %v1450 = vpop.f32.mrb[0].mxu0
    %v1451 = vadd.f32 %v1290, %v1450
    %v1452 = vpop.f32.mrb[0].mxu0
    %1453 = vmatprep.mubr.bf16.mxu0 %v700
    %1454 = vmatmul.mubr.bf16.gmra.mrb[0].mxu0 %v699
    %v1455 = vpop.f32.mrb[0].mxu0
    %v1456 = vadd.f32 %v1295, %v1455
    %v1457 = vpop.f32.mrb[0].mxu0
    %v1458 = vpop.f32.mrb[0].mxu0
    %v1459 = vadd.f32 %v1298, %v1458
    %v1460 = vpop.f32.mrb[0].mxu0
    %1461 = vmatprep.mubr.bf16.mxu0 %v707
    %1462 = vmatmul.mubr.bf16.gmra.mrb[0].mxu0 %v706
    %v1463 = vpop.f32.mrb[0].mxu0
    %v1464 = vadd.f32 %v1303, %v1463
    %v1465 = vpop.f32.mrb[0].mxu0
    %v1466 = vpop.f32.mrb[0].mxu0
    %v1467 = vadd.f32 %v1306, %v1466
    %v1468 = vpop.f32.mrb[0].mxu0
    %1469 = vmatprep.mubr.bf16.mxu0 %v714
    %1470 = vmatmul.mubr.bf16.gmra.mrb[0].mxu0 %v713
    %v1471 = vpop.f32.mrb[0].mxu0
    %v1472 = vadd.f32 %v1311, %v1471
    %v1473 = vpop.f32.mrb[0].mxu0
    %v1474 = vpop.f32.mrb[0].mxu0
    %v1475 = vadd.f32 %v1314, %v1474
    %v1476 = vpop.f32.mrb[0].mxu0
    %1477 = vmatprep.mubr.bf16.mxu0 %v721
    %1478 = vmatmul.mubr.bf16.gmra.mrb[0].mxu0 %v720
    %v1479 = vpop.f32.mrb[0].mxu0
    %v1480 = vadd.f32 %v1319, %v1479
    %v1481 = vpop.f32.mrb[0].mxu0
    %v1482 = vpop.f32.mrb[0].mxu0
    %v1483 = vadd.f32 %v1322, %v1482
    %v1484 = vpop.f32.mrb[0].mxu0
    %1485 = vdwg.mxu0
    %1486 = vmatprep.subr.bf16.mxu0 0
    %1487 = vmatpush1.bf16.msra.mxu0 %v1049
    %1488 = vmatprep.subr.bf16.mxu0 0
    %1489 = vmatpush1.bf16.msra.mxu0 %v1050
    %1490 = vmatprep.subr.bf16.mxu0 0
    %1491 = vmatpush1.bf16.msra.mxu0 %v1051
    %1492 = vmatprep.subr.bf16.mxu0 0
    %1493 = vmatpush1.bf16.msra.mxu0 %v1052
    %1494 = vmatprep.subr.bf16.mxu0 0
    %1495 = vmatpush1.bf16.msra.mxu0 %v1053
    %1496 = vmatprep.subr.bf16.mxu0 0
    %1497 = vmatpush1.bf16.msra.mxu0 %v1054
    %1498 = vmatprep.subr.bf16.mxu0 0
    %1499 = vmatpush1.bf16.msra.mxu0 %v1055
    %1500 = vmatprep.subr.bf16.mxu0 0
    %1501 = vmatpush1.bf16.msra.mxu0 %v1056
    %1502 = vmatprep.subr.bf16.mxu0 0
    %1503 = vmatpush1.bf16.msra.mxu0 %v1057
    %1504 = vmatprep.subr.bf16.mxu0 0
    %1505 = vmatpush1.bf16.msra.mxu0 %v1058
    %1506 = vmatprep.subr.bf16.mxu0 0
    %1507 = vmatpush1.bf16.msra.mxu0 %v1059
    %1508 = vmatprep.subr.bf16.mxu0 0
    %1509 = vmatpush1.bf16.msra.mxu0 %v1060
    %1510 = vmatprep.subr.bf16.mxu0 0
    %1511 = vmatpush1.bf16.msra.mxu0 %v1061
    %1512 = vmatprep.subr.bf16.mxu0 0
    %1513 = vmatpush1.bf16.msra.mxu0 %v1062
    %1514 = vmatprep.subr.bf16.mxu0 0
    %1515 = vmatpush1.bf16.msra.mxu0 %v1063
    %1516 = vmatprep.subr.bf16.mxu0 0
    %1517 = vmatpush1.bf16.msra.mxu0 %v1064
    %1518 = vmatprep.mubr.bf16.mxu0 %v618
    %1519 = vmatmul.mubr.bf16.gmra.mrb[0].mxu0 %v617
    %v1520 = vpop.f32.mrb[0].mxu0
    %v1521 = vadd.f32 %v1360, %v1520
    %v1522 = vpop.f32.mrb[0].mxu0
    %v1523 = vpop.f32.mrb[0].mxu0
    %v1524 = vadd.f32 %v1363, %v1523
    %v1525 = vpop.f32.mrb[0].mxu0
    %1526 = vmatprep.mubr.bf16.mxu0 %v625
    %1527 = vmatmul.mubr.bf16.gmra.mrb[0].mxu0 %v624
    %v1528 = vpop.f32.mrb[0].mxu0
    %v1529 = vadd.f32 %v1368, %v1528
    %v1530 = vpop.f32.mrb[0].mxu0
    %v1531 = vpop.f32.mrb[0].mxu0
    %v1532 = vadd.f32 %v1371, %v1531
    %v1533 = vpop.f32.mrb[0].mxu0
    %1534 = vmatprep.mubr.bf16.mxu0 %v632
    %1535 = vmatmul.mubr.bf16.gmra.mrb[0].mxu0 %v631
    %v1536 = vpop.f32.mrb[0].mxu0
    %v1537 = vadd.f32 %v1376, %v1536
    %v1538 = vpop.f32.mrb[0].mxu0
    %v1539 = vpop.f32.mrb[0].mxu0
    %v1540 = vadd.f32 %v1379, %v1539
    %v1541 = vpop.f32.mrb[0].mxu0
    %1542 = vmatprep.mubr.bf16.mxu0 %v639
    %1543 = vmatmul.mubr.bf16.gmra.mrb[0].mxu0 %v638
    %v1544 = vpop.f32.mrb[0].mxu0
    %v1545 = vadd.f32 %v1384, %v1544
    %v1546 = vpop.f32.mrb[0].mxu0
    %v1547 = vpop.f32.mrb[0].mxu0
    %v1548 = vadd.f32 %v1387, %v1547
    %v1549 = vpop.f32.mrb[0].mxu0
    %1550 = vmatprep.mubr.bf16.mxu0 %v646
    %1551 = vmatmul.mubr.bf16.gmra.mrb[0].mxu0 %v645
    %v1552 = vpop.f32.mrb[0].mxu0
    %v1553 = vadd.f32 %v1392, %v1552
    %v1554 = vpop.f32.mrb[0].mxu0
    %v1555 = vpop.f32.mrb[0].mxu0
    %v1556 = vadd.f32 %v1395, %v1555
    %v1557 = vpop.f32.mrb[0].mxu0
    %1558 = vmatprep.mubr.bf16.mxu0 %v653
    %1559 = vmatmul.mubr.bf16.gmra.mrb[0].mxu0 %v652
    %v1560 = vpop.f32.mrb[0].mxu0
    %v1561 = vadd.f32 %v1400, %v1560
    %v1562 = vpop.f32.mrb[0].mxu0
    %v1563 = vpop.f32.mrb[0].mxu0
    %v1564 = vadd.f32 %v1403, %v1563
    %v1565 = vpop.f32.mrb[0].mxu0
    %1566 = vmatprep.mubr.bf16.mxu0 %v660
    %1567 = vmatmul.mubr.bf16.gmra.mrb[0].mxu0 %v659
    %v1568 = vpop.f32.mrb[0].mxu0
    %v1569 = vadd.f32 %v1408, %v1568
    %v1570 = vpop.f32.mrb[0].mxu0
    %v1571 = vpop.f32.mrb[0].mxu0
    %v1572 = vadd.f32 %v1411, %v1571
    %v1573 = vpop.f32.mrb[0].mxu0
    %1574 = vmatprep.mubr.bf16.mxu0 %v667
    %1575 = vmatmul.mubr.bf16.gmra.mrb[0].mxu0 %v666
    %v1576 = vpop.f32.mrb[0].mxu0
    %v1577 = vadd.f32 %v1416, %v1576
    %v1578 = vpop.f32.mrb[0].mxu0
    %v1579 = vpop.f32.mrb[0].mxu0
    %v1580 = vadd.f32 %v1419, %v1579
    %v1581 = vpop.f32.mrb[0].mxu0
    %1582 = vmatprep.mubr.bf16.mxu0 %v674
    %1583 = vmatmul.mubr.bf16.gmra.mrb[0].mxu0 %v673
    %v1584 = vpop.f32.mrb[0].mxu0
    %v1585 = vadd.f32 %v1424, %v1584
    %v1586 = vpop.f32.mrb[0].mxu0
    %v1587 = vpop.f32.mrb[0].mxu0
    %v1588 = vadd.f32 %v1427, %v1587
    %v1589 = vpop.f32.mrb[0].mxu0
    %1590 = vmatprep.mubr.bf16.mxu0 %v681
    %1591 = vmatmul.mubr.bf16.gmra.mrb[0].mxu0 %v680
    %v1592 = vpop.f32.mrb[0].mxu0
    %v1593 = vadd.f32 %v1432, %v1592
    %v1594 = vpop.f32.mrb[0].mxu0
    %v1595 = vpop.f32.mrb[0].mxu0
    %v1596 = vadd.f32 %v1435, %v1595
    %v1597 = vpop.f32.mrb[0].mxu0
    %1598 = vmatprep.mubr.bf16.mxu0 %v688
    %1599 = vmatmul.mubr.bf16.gmra.mrb[0].mxu0 %v687
    %v1600 = vpop.f32.mrb[0].mxu0
    %v1601 = vadd.f32 %v1440, %v1600
    %v1602 = vpop.f32.mrb[0].mxu0
    %v1603 = vpop.f32.mrb[0].mxu0
    %v1604 = vadd.f32 %v1443, %v1603
    %v1605 = vpop.f32.mrb[0].mxu0
    %1606 = vmatprep.mubr.bf16.mxu0 %v695
    %1607 = vmatmul.mubr.bf16.gmra.mrb[0].mxu0 %v694
    %v1608 = vpop.f32.mrb[0].mxu0
    %v1609 = vadd.f32 %v1448, %v1608
    %v1610 = vpop.f32.mrb[0].mxu0
    %v1611 = vpop.f32.mrb[0].mxu0
    %v1612 = vadd.f32 %v1451, %v1611
    %v1613 = vpop.f32.mrb[0].mxu0
    %1614 = vmatprep.mubr.bf16.mxu0 %v702
    %1615 = vmatmul.mubr.bf16.gmra.mrb[0].mxu0 %v701
    %v1616 = vpop.f32.mrb[0].mxu0
    %v1617 = vadd.f32 %v1456, %v1616
    %v1618 = vpop.f32.mrb[0].mxu0
    %v1619 = vpop.f32.mrb[0].mxu0
    %v1620 = vadd.f32 %v1459, %v1619
    %v1621 = vpop.f32.mrb[0].mxu0
    %1622 = vmatprep.mubr.bf16.mxu0 %v709
    %1623 = vmatmul.mubr.bf16.gmra.mrb[0].mxu0 %v708
    %v1624 = vpop.f32.mrb[0].mxu0
    %v1625 = vadd.f32 %v1464, %v1624
    %v1626 = vpop.f32.mrb[0].mxu0
    %v1627 = vpop.f32.mrb[0].mxu0
    %v1628 = vadd.f32 %v1467, %v1627
    %v1629 = vpop.f32.mrb[0].mxu0
    %1630 = vmatprep.mubr.bf16.mxu0 %v716
    %1631 = vmatmul.mubr.bf16.gmra.mrb[0].mxu0 %v715
    %v1632 = vpop.f32.mrb[0].mxu0
    %v1633 = vadd.f32 %v1472, %v1632
    %v1634 = vpop.f32.mrb[0].mxu0
    %v1635 = vpop.f32.mrb[0].mxu0
    %v1636 = vadd.f32 %v1475, %v1635
    %v1637 = vpop.f32.mrb[0].mxu0
    %1638 = vmatprep.mubr.bf16.mxu0 %v723
    %1639 = vmatmul.mubr.bf16.gmra.mrb[0].mxu0 %v722
    %v1640 = vpop.f32.mrb[0].mxu0
    %v1641 = vadd.f32 %v1480, %v1640
    %v1642 = vpop.f32.mrb[0].mxu0
    %v1643 = vpop.f32.mrb[0].mxu0
    %v1644 = vadd.f32 %v1483, %v1643
    %v1645 = vpop.f32.mrb[0].mxu0
    %1646 = vdwg.mxu0
    %1647 = vmatprep.subr.bf16.mxu0 0
    %1648 = vmatpush1.bf16.msra.mxu0 %v1065
    %1649 = vmatprep.subr.bf16.mxu0 0
    %1650 = vmatpush1.bf16.msra.mxu0 0
    %1651 = vmatprep.subr.bf16.mxu0 0
    %1652 = vmatpush1.bf16.msra.mxu0 0
    %1653 = vmatprep.subr.bf16.mxu0 0
    %1654 = vmatpush1.bf16.msra.mxu0 0
    %1655 = vmatprep.subr.bf16.mxu0 0
    %1656 = vmatpush1.bf16.msra.mxu0 0
    %1657 = vmatprep.subr.bf16.mxu0 0
    %1658 = vmatpush1.bf16.msra.mxu0 0
    %1659 = vmatprep.subr.bf16.mxu0 0
    %1660 = vmatpush1.bf16.msra.mxu0 0
    %1661 = vmatprep.subr.bf16.mxu0 0
    %1662 = vmatpush1.bf16.msra.mxu0 0
    %1663 = vmatprep.subr.bf16.mxu0 0
    %1664 = vmatpush1.bf16.msra.mxu0 0
    %1665 = vmatprep.subr.bf16.mxu0 0
    %1666 = vmatpush1.bf16.msra.mxu0 0
    %1667 = vmatprep.subr.bf16.mxu0 0
    %1668 = vmatpush1.bf16.msra.mxu0 0
    %1669 = vmatprep.subr.bf16.mxu0 0
    %1670 = vmatpush1.bf16.msra.mxu0 0
    %1671 = vmatprep.subr.bf16.mxu0 0
    %1672 = vmatpush1.bf16.msra.mxu0 0
    %1673 = vmatprep.subr.bf16.mxu0 0
    %1674 = vmatpush1.bf16.msra.mxu0 0
    %1675 = vmatprep.subr.bf16.mxu0 0
    %1676 = vmatpush1.bf16.msra.mxu0 0
    %1677 = vmatprep.subr.bf16.mxu0 0
    %1678 = vmatpush1.bf16.msra.mxu0 0
    %1679 = vmatprep.mubr.bf16.mxu0 0
    %1680 = vmatmul.mubr.bf16.gmra.mrb[0].mxu0 %v1117
    %v1681 = vpop.f32.mrb[0].mxu0
    %v1682 = vadd.f32 %v1521, %v1681
    %v1683 = vpop.f32.mrb[0].mxu0
    %v1684 = vpop.f32.mrb[0].mxu0
    %v1685 = vadd.f32 %v1524, %v1684
    %v1686 = vpop.f32.mrb[0].mxu0
    %1687 = vmatprep.mubr.bf16.mxu0 0
    %1688 = vmatmul.mubr.bf16.gmra.mrb[0].mxu0 %v1120
    %v1689 = vpop.f32.mrb[0].mxu0
    %v1690 = vadd.f32 %v1529, %v1689
    %v1691 = vpop.f32.mrb[0].mxu0
    %v1692 = vpop.f32.mrb[0].mxu0
    %v1693 = vadd.f32 %v1532, %v1692
    %v1694 = vpop.f32.mrb[0].mxu0
    %1695 = vmatprep.mubr.bf16.mxu0 0
    %1696 = vmatmul.mubr.bf16.gmra.mrb[0].mxu0 %v1123
    %v1697 = vpop.f32.mrb[0].mxu0
    %v1698 = vadd.f32 %v1537, %v1697
    %v1699 = vpop.f32.mrb[0].mxu0
    %v1700 = vpop.f32.mrb[0].mxu0
    %v1701 = vadd.f32 %v1540, %v1700
    %v1702 = vpop.f32.mrb[0].mxu0
    %1703 = vmatprep.mubr.bf16.mxu0 0
    %1704 = vmatmul.mubr.bf16.gmra.mrb[0].mxu0 %v1126
    %v1705 = vpop.f32.mrb[0].mxu0
    %v1706 = vadd.f32 %v1545, %v1705
    %v1707 = vpop.f32.mrb[0].mxu0
    %v1708 = vpop.f32.mrb[0].mxu0
    %v1709 = vadd.f32 %v1548, %v1708
    %v1710 = vpop.f32.mrb[0].mxu0
    %1711 = vmatprep.mubr.bf16.mxu0 0
    %1712 = vmatmul.mubr.bf16.gmra.mrb[0].mxu0 %v1129
    %v1713 = vpop.f32.mrb[0].mxu0
    %v1714 = vadd.f32 %v1553, %v1713
    %v1715 = vpop.f32.mrb[0].mxu0
    %v1716 = vpop.f32.mrb[0].mxu0
    %v1717 = vadd.f32 %v1556, %v1716
    %v1718 = vpop.f32.mrb[0].mxu0
    %1719 = vmatprep.mubr.bf16.mxu0 0
    %1720 = vmatmul.mubr.bf16.gmra.mrb[0].mxu0 %v1132
    %v1721 = vpop.f32.mrb[0].mxu0
    %v1722 = vadd.f32 %v1561, %v1721
    %v1723 = vpop.f32.mrb[0].mxu0
    %v1724 = vpop.f32.mrb[0].mxu0
    %v1725 = vadd.f32 %v1564, %v1724
    %v1726 = vpop.f32.mrb[0].mxu0
    %1727 = vmatprep.mubr.bf16.mxu0 0
    %1728 = vmatmul.mubr.bf16.gmra.mrb[0].mxu0 %v1135
    %v1729 = vpop.f32.mrb[0].mxu0
    %v1730 = vadd.f32 %v1569, %v1729
    %v1731 = vpop.f32.mrb[0].mxu0
    %v1732 = vpop.f32.mrb[0].mxu0
    %v1733 = vadd.f32 %v1572, %v1732
    %v1734 = vpop.f32.mrb[0].mxu0
    %1735 = vmatprep.mubr.bf16.mxu0 0
    %1736 = vmatmul.mubr.bf16.gmra.mrb[0].mxu0 %v1138
    %v1737 = vpop.f32.mrb[0].mxu0
    %v1738 = vadd.f32 %v1577, %v1737
    %v1739 = vpop.f32.mrb[0].mxu0
    %v1740 = vpop.f32.mrb[0].mxu0
    %v1741 = vadd.f32 %v1580, %v1740
    %v1742 = vpop.f32.mrb[0].mxu0
    %1743 = vmatprep.mubr.bf16.mxu0 0
    %1744 = vmatmul.mubr.bf16.gmra.mrb[0].mxu0 %v1141
    %v1745 = vpop.f32.mrb[0].mxu0
    %v1746 = vadd.f32 %v1585, %v1745
    %v1747 = vpop.f32.mrb[0].mxu0
    %v1748 = vpop.f32.mrb[0].mxu0
    %v1749 = vadd.f32 %v1588, %v1748
    %v1750 = vpop.f32.mrb[0].mxu0
    %1751 = vmatprep.mubr.bf16.mxu0 0
    %1752 = vmatmul.mubr.bf16.gmra.mrb[0].mxu0 %v1144
    %v1753 = vpop.f32.mrb[0].mxu0
    %v1754 = vadd.f32 %v1593, %v1753
    %v1755 = vpop.f32.mrb[0].mxu0
    %v1756 = vpop.f32.mrb[0].mxu0
    %v1757 = vadd.f32 %v1596, %v1756
    %v1758 = vpop.f32.mrb[0].mxu0
    %1759 = vmatprep.mubr.bf16.mxu0 0
    %1760 = vmatmul.mubr.bf16.gmra.mrb[0].mxu0 %v1147
    %v1761 = vpop.f32.mrb[0].mxu0
    %v1762 = vadd.f32 %v1601, %v1761
    %v1763 = vpop.f32.mrb[0].mxu0
    %v1764 = vpop.f32.mrb[0].mxu0
    %v1765 = vadd.f32 %v1604, %v1764
    %v1766 = vpop.f32.mrb[0].mxu0
    %1767 = vmatprep.mubr.bf16.mxu0 0
    %1768 = vmatmul.mubr.bf16.gmra.mrb[0].mxu0 %v1150
    %v1769 = vpop.f32.mrb[0].mxu0
    %v1770 = vadd.f32 %v1609, %v1769
    %v1771 = vpop.f32.mrb[0].mxu0
    %v1772 = vpop.f32.mrb[0].mxu0
    %v1773 = vadd.f32 %v1612, %v1772
    %v1774 = vpop.f32.mrb[0].mxu0
    %1775 = vmatprep.mubr.bf16.mxu0 0
    %1776 = vmatmul.mubr.bf16.gmra.mrb[0].mxu0 %v1153
    %v1777 = vpop.f32.mrb[0].mxu0
    %v1778 = vadd.f32 %v1617, %v1777
    %v1779 = vpop.f32.mrb[0].mxu0
    %v1780 = vpop.f32.mrb[0].mxu0
    %v1781 = vadd.f32 %v1620, %v1780
    %v1782 = vpop.f32.mrb[0].mxu0
    %1783 = vmatprep.mubr.bf16.mxu0 0
    %1784 = vmatmul.mubr.bf16.gmra.mrb[0].mxu0 %v1156
    %v1785 = vpop.f32.mrb[0].mxu0
    %v1786 = vadd.f32 %v1625, %v1785
    %v1787 = vpop.f32.mrb[0].mxu0
    %v1788 = vpop.f32.mrb[0].mxu0
    %v1789 = vadd.f32 %v1628, %v1788
    %v1790 = vpop.f32.mrb[0].mxu0
    %1791 = vmatprep.mubr.bf16.mxu0 0
    %1792 = vmatmul.mubr.bf16.gmra.mrb[0].mxu0 %v1159
    %v1793 = vpop.f32.mrb[0].mxu0
    %v1794 = vadd.f32 %v1633, %v1793
    %v1795 = vpop.f32.mrb[0].mxu0
    %v1796 = vpop.f32.mrb[0].mxu0
    %v1797 = vadd.f32 %v1636, %v1796
    %v1798 = vpop.f32.mrb[0].mxu0
    %1799 = vmatprep.mubr.bf16.mxu0 0
    %1800 = vmatmul.mubr.bf16.gmra.mrb[0].mxu0 %v1162
    %v1801 = vpop.f32.mrb[0].mxu0
    %v1802 = vadd.f32 %v1641, %v1801
    %v1803 = vpop.f32.mrb[0].mxu0
    %v1804 = vpop.f32.mrb[0].mxu0
    %v1805 = vadd.f32 %v1644, %v1804
    %v1806 = vpop.f32.mrb[0].mxu0
    %1807 = vdwg.mxu0
    %v1808 = vmax.f32 %v1682, 0.0
    %v1809 = vmax.f32 %v1685, 0.0
    %v1810 = vmax.f32 %v1690, 0.0
    %v1811 = vmax.f32 %v1693, 0.0
    %v1812 = vmax.f32 %v1698, 0.0
    %v1813 = vmax.f32 %v1701, 0.0
    %v1814 = vmax.f32 %v1706, 0.0
    %v1815 = vmax.f32 %v1709, 0.0
    %v1816 = vmax.f32 %v1714, 0.0
    %v1817 = vmax.f32 %v1717, 0.0
    %v1818 = vmax.f32 %v1722, 0.0
    %v1819 = vmax.f32 %v1725, 0.0
    %v1820 = vmax.f32 %v1730, 0.0
    %v1821 = vmax.f32 %v1733, 0.0
    %v1822 = vmax.f32 %v1738, 0.0
    %v1823 = vmax.f32 %v1741, 0.0
    %v1824 = vmax.f32 %v1746, 0.0
    %v1825 = vmax.f32 %v1749, 0.0
    %v1826 = vmax.f32 %v1754, 0.0
    %v1827 = vmax.f32 %v1757, 0.0
    %v1828 = vmax.f32 %v1762, 0.0
    %v1829 = vmax.f32 %v1765, 0.0
    %v1830 = vmax.f32 %v1770, 0.0
    %v1831 = vmax.f32 %v1773, 0.0
    %v1832 = vmax.f32 %v1778, 0.0
    %v1833 = vmax.f32 %v1781, 0.0
    %v1834 = vmax.f32 %v1786, 0.0
    %v1835 = vmax.f32 %v1789, 0.0
    %v1836 = vmax.f32 %v1794, 0.0
    %v1837 = vmax.f32 %v1797, 0.0
    %v1838 = vmax.f32 %v1802, 0.0
    %v1839 = vmax.f32 %v1805, 0.0
    %v1840 = vpack.c.bf16 %v1809, %v1808
    %v1841 = vpack.c.bf16 %v1811, %v1810
    %v1842 = vpack.c.bf16 %v1813, %v1812
    %v1843 = vpack.c.bf16 %v1815, %v1814
    %v1844 = vpack.c.bf16 %v1817, %v1816
    %v1845 = vpack.c.bf16 %v1819, %v1818
    %v1846 = vpack.c.bf16 %v1821, %v1820
    %v1847 = vpack.c.bf16 %v1823, %v1822
    %v1848 = vpack.c.bf16 %v1825, %v1824
    %v1849 = vpack.c.bf16 %v1827, %v1826
    %v1850 = vpack.c.bf16 %v1829, %v1828
    %v1851 = vpack.c.bf16 %v1831, %v1830
    %v1852 = vpack.c.bf16 %v1833, %v1832
    %v1853 = vpack.c.bf16 %v1835, %v1834
    %v1854 = vpack.c.bf16 %v1837, %v1836
    %v1855 = vpack.c.bf16 %v1839, %v1838
    %v1856 = vld [vmem:[%s3] sm:$0xf]
    %v1857 = vld [vmem:[%s3 + $0x4] sm:$0xf]
    %v1858 = vld [vmem:[%s3 + $0x8] sm:$0xf]
    %v1859 = vld [vmem:[%s3 + $0xc] sm:$0xf]
    %v1860 = vld [vmem:[%s3 + $0x10] sm:$0xf]
    %v1861 = vld [vmem:[%s3 + $0x14] sm:$0xf]
    %v1862 = vld [vmem:[%s3 + $0x18] sm:$0xf]
    %v1863 = vld [vmem:[%s3 + $0x1c] sm:$0xf]
    %v1864 = vld [vmem:[%s3 + $0x20] sm:$0xf]
    %v1865 = vld [vmem:[%s3 + $0x24] sm:$0xf]
    %v1866 = vld [vmem:[%s3 + $0x28] sm:$0xf]
    %v1867 = vld [vmem:[%s3 + $0x2c] sm:$0xf]
    %v1868 = vld [vmem:[%s3 + $0x30] sm:$0xf]
    %v1869 = vld [vmem:[%s3 + $0x34] sm:$0xf]
    %v1870 = vld [vmem:[%s3 + $0x38] sm:$0xf]
    %v1871 = vld [vmem:[%s3 + $0x3c] sm:$0xf]
    %v1872 = vld [vmem:[%s4] sm:$0x1]
    %v1874 = vlaneseq
    %v1875 = vshrl.u32 %v1874, 7
    %v1876 = vsub.s32 0, %v1875
    %v1877 = vrot.slane %v1872, %v1876
    %v1895 = vunpack.c.l.b16 %v1856
    %v1896 = vunpack.c.l.b16 %v1857
    %v1897 = vunpack.c.l.b16 %v1858
    %v1898 = vunpack.c.l.b16 %v1859
    %v1899 = vunpack.c.l.b16 %v1860
    %v1900 = vunpack.c.l.b16 %v1861
    %v1901 = vunpack.c.l.b16 %v1862
    %v1902 = vunpack.c.l.b16 %v1863
    %v1903 = vunpack.c.l.b16 %v1864
    %v1904 = vunpack.c.l.b16 %v1865
    %v1905 = vunpack.c.l.b16 %v1866
    %v1906 = vunpack.c.l.b16 %v1867
    %v1907 = vunpack.c.l.b16 %v1868
    %v1908 = vunpack.c.l.b16 %v1869
    %v1909 = vunpack.c.l.b16 %v1870
    %v1910 = vunpack.c.l.b16 %v1871
    %v1911 = vpack.c.b16 %v1896, %v1895
    %v1912 = vpack.c.b16 %v1898, %v1897
    %v1913 = vpack.c.b16 %v1900, %v1899
    %v1914 = vpack.c.b16 %v1902, %v1901
    %v1915 = vpack.c.b16 %v1904, %v1903
    %v1916 = vpack.c.b16 %v1906, %v1905
    %v1917 = vpack.c.b16 %v1908, %v1907
    %v1918 = vpack.c.b16 %v1910, %v1909
    %1927 = vmatprep.subr.bf16.mxu0 0
    %1928 = vmatpush1.bf16.msra.mxu0 %v1911
    %1929 = vmatprep.subr.bf16.mxu0 0
    %1930 = vmatpush1.bf16.msra.mxu0 %v1912
    %1931 = vmatprep.subr.bf16.mxu0 0
    %1932 = vmatpush1.bf16.msra.mxu0 %v1913
    %1933 = vmatprep.subr.bf16.mxu0 0
    %1934 = vmatpush1.bf16.msra.mxu0 %v1914
    %1935 = vmatprep.subr.bf16.mxu0 0
    %1936 = vmatpush1.bf16.msra.mxu0 %v1915
    %1937 = vmatprep.subr.bf16.mxu0 0
    %1938 = vmatpush1.bf16.msra.mxu0 %v1916
    %1939 = vmatprep.subr.bf16.mxu0 0
    %1940 = vmatpush1.bf16.msra.mxu0 %v1917
    %1941 = vmatprep.subr.bf16.mxu0 0
    %1942 = vmatpush1.bf16.msra.mxu0 %v1918
    %1943 = vmatprep.subr.bf16.mxu0 0
    %1944 = vmatpush1.bf16.msra.mxu0 0
    %1945 = vmatprep.subr.bf16.mxu0 0
    %1946 = vmatpush1.bf16.msra.mxu0 0
    %1947 = vmatprep.subr.bf16.mxu0 0
    %1948 = vmatpush1.bf16.msra.mxu0 0
    %1949 = vmatprep.subr.bf16.mxu0 0
    %1950 = vmatpush1.bf16.msra.mxu0 0
    %1951 = vmatprep.subr.bf16.mxu0 0
    %1952 = vmatpush1.bf16.msra.mxu0 0
    %1953 = vmatprep.subr.bf16.mxu0 0
    %1954 = vmatpush1.bf16.msra.mxu0 0
    %1955 = vmatprep.subr.bf16.mxu0 0
    %1956 = vmatpush1.bf16.msra.mxu0 0
    %1957 = vmatprep.subr.bf16.mxu0 0
    %1958 = vmatpush1.bf16.msra.mxu0 0
    %1959 = vmatprep.mubr.bf16.mxu0 0
    %1960 = vmatmul.mubr.bf16.gmra.mrb[0].mxu0 %v1840
    %v1961 = vpop.f32.mrb[0].mxu0
    %v1962 = vadd.f32 %v1877, %v1961
    %v1963 = vpop.f32.mrb[0].mxu0
    %v1964 = vpop.f32.mrb[0].mxu0
    %v1965 = vadd.f32 %v1877, %v1964
    %v1966 = vpop.f32.mrb[0].mxu0
    %1967 = vmatprep.mubr.bf16.mxu0 0
    %1968 = vmatmul.mubr.bf16.gmra.mrb[0].mxu0 %v1841
    %v1969 = vpop.f32.mrb[0].mxu0
    %v1970 = vadd.f32 %v1877, %v1969
    %v1971 = vpop.f32.mrb[0].mxu0
    %v1972 = vpop.f32.mrb[0].mxu0
    %v1973 = vadd.f32 %v1877, %v1972
    %v1974 = vpop.f32.mrb[0].mxu0
    %1975 = vmatprep.mubr.bf16.mxu0 0
    %1976 = vmatmul.mubr.bf16.gmra.mrb[0].mxu0 %v1842
    %v1977 = vpop.f32.mrb[0].mxu0
    %v1978 = vadd.f32 %v1877, %v1977
    %v1979 = vpop.f32.mrb[0].mxu0
    %v1980 = vpop.f32.mrb[0].mxu0
    %v1981 = vadd.f32 %v1877, %v1980
    %v1982 = vpop.f32.mrb[0].mxu0
    %1983 = vmatprep.mubr.bf16.mxu0 0
    %1984 = vmatmul.mubr.bf16.gmra.mrb[0].mxu0 %v1843
    %v1985 = vpop.f32.mrb[0].mxu0
    %v1986 = vadd.f32 %v1877, %v1985
    %v1987 = vpop.f32.mrb[0].mxu0
    %v1988 = vpop.f32.mrb[0].mxu0
    %v1989 = vadd.f32 %v1877, %v1988
    %v1990 = vpop.f32.mrb[0].mxu0
    %1991 = vmatprep.mubr.bf16.mxu0 0
    %1992 = vmatmul.mubr.bf16.gmra.mrb[0].mxu0 %v1844
    %v1993 = vpop.f32.mrb[0].mxu0
    %v1994 = vadd.f32 %v1877, %v1993
    %v1995 = vpop.f32.mrb[0].mxu0
    %v1996 = vpop.f32.mrb[0].mxu0
    %v1997 = vadd.f32 %v1877, %v1996
    %v1998 = vpop.f32.mrb[0].mxu0
    %1999 = vmatprep.mubr.bf16.mxu0 0
    %2000 = vmatmul.mubr.bf16.gmra.mrb[0].mxu0 %v1845
    %v2001 = vpop.f32.mrb[0].mxu0
    %v2002 = vadd.f32 %v1877, %v2001
    %v2003 = vpop.f32.mrb[0].mxu0
    %v2004 = vpop.f32.mrb[0].mxu0
    %v2005 = vadd.f32 %v1877, %v2004
    %v2006 = vpop.f32.mrb[0].mxu0
    %2007 = vmatprep.mubr.bf16.mxu0 0
    %2008 = vmatmul.mubr.bf16.gmra.mrb[0].mxu0 %v1846
    %v2009 = vpop.f32.mrb[0].mxu0
    %v2010 = vadd.f32 %v1877, %v2009
    %v2011 = vpop.f32.mrb[0].mxu0
    %v2012 = vpop.f32.mrb[0].mxu0
    %v2013 = vadd.f32 %v1877, %v2012
    %v2014 = vpop.f32.mrb[0].mxu0
    %2015 = vmatprep.mubr.bf16.mxu0 0
    %2016 = vmatmul.mubr.bf16.gmra.mrb[0].mxu0 %v1847
    %v2017 = vpop.f32.mrb[0].mxu0
    %v2018 = vadd.f32 %v1877, %v2017
    %v2019 = vpop.f32.mrb[0].mxu0
    %v2020 = vpop.f32.mrb[0].mxu0
    %v2021 = vadd.f32 %v1877, %v2020
    %v2022 = vpop.f32.mrb[0].mxu0
    %2023 = vmatprep.mubr.bf16.mxu0 0
    %2024 = vmatmul.mubr.bf16.gmra.mrb[0].mxu0 %v1848
    %v2025 = vpop.f32.mrb[0].mxu0
    %v2026 = vadd.f32 %v1877, %v2025
    %v2027 = vpop.f32.mrb[0].mxu0
    %v2028 = vpop.f32.mrb[0].mxu0
    %v2029 = vadd.f32 %v1877, %v2028
    %v2030 = vpop.f32.mrb[0].mxu0
    %2031 = vmatprep.mubr.bf16.mxu0 0
    %2032 = vmatmul.mubr.bf16.gmra.mrb[0].mxu0 %v1849
    %v2033 = vpop.f32.mrb[0].mxu0
    %v2034 = vadd.f32 %v1877, %v2033
    %v2035 = vpop.f32.mrb[0].mxu0
    %v2036 = vpop.f32.mrb[0].mxu0
    %v2037 = vadd.f32 %v1877, %v2036
    %v2038 = vpop.f32.mrb[0].mxu0
    %2039 = vmatprep.mubr.bf16.mxu0 0
    %2040 = vmatmul.mubr.bf16.gmra.mrb[0].mxu0 %v1850
    %v2041 = vpop.f32.mrb[0].mxu0
    %v2042 = vadd.f32 %v1877, %v2041
    %v2043 = vpop.f32.mrb[0].mxu0
    %v2044 = vpop.f32.mrb[0].mxu0
    %v2045 = vadd.f32 %v1877, %v2044
    %v2046 = vpop.f32.mrb[0].mxu0
    %2047 = vmatprep.mubr.bf16.mxu0 0
    %2048 = vmatmul.mubr.bf16.gmra.mrb[0].mxu0 %v1851
    %v2049 = vpop.f32.mrb[0].mxu0
    %v2050 = vadd.f32 %v1877, %v2049
    %v2051 = vpop.f32.mrb[0].mxu0
    %v2052 = vpop.f32.mrb[0].mxu0
    %v2053 = vadd.f32 %v1877, %v2052
    %v2054 = vpop.f32.mrb[0].mxu0
    %2055 = vmatprep.mubr.bf16.mxu0 0
    %2056 = vmatmul.mubr.bf16.gmra.mrb[0].mxu0 %v1852
    %v2057 = vpop.f32.mrb[0].mxu0
    %v2058 = vadd.f32 %v1877, %v2057
    %v2059 = vpop.f32.mrb[0].mxu0
    %v2060 = vpop.f32.mrb[0].mxu0
    %v2061 = vadd.f32 %v1877, %v2060
    %v2062 = vpop.f32.mrb[0].mxu0
    %2063 = vmatprep.mubr.bf16.mxu0 0
    %2064 = vmatmul.mubr.bf16.gmra.mrb[0].mxu0 %v1853
    %v2065 = vpop.f32.mrb[0].mxu0
    %v2066 = vadd.f32 %v1877, %v2065
    %v2067 = vpop.f32.mrb[0].mxu0
    %v2068 = vpop.f32.mrb[0].mxu0
    %v2069 = vadd.f32 %v1877, %v2068
    %v2070 = vpop.f32.mrb[0].mxu0
    %2071 = vmatprep.mubr.bf16.mxu0 0
    %2072 = vmatmul.mubr.bf16.gmra.mrb[0].mxu0 %v1854
    %v2073 = vpop.f32.mrb[0].mxu0
    %v2074 = vadd.f32 %v1877, %v2073
    %v2075 = vpop.f32.mrb[0].mxu0
    %v2076 = vpop.f32.mrb[0].mxu0
    %v2077 = vadd.f32 %v1877, %v2076
    %v2078 = vpop.f32.mrb[0].mxu0
    %2079 = vmatprep.mubr.bf16.mxu0 0
    %2080 = vmatmul.mubr.bf16.gmra.mrb[0].mxu0 %v1855
    %v2081 = vpop.f32.mrb[0].mxu0
    %v2082 = vadd.f32 %v1877, %v2081
    %v2083 = vpop.f32.mrb[0].mxu0
    %v2084 = vpop.f32.mrb[0].mxu0
    %v2085 = vadd.f32 %v1877, %v2084
    %v2086 = vpop.f32.mrb[0].mxu0
    %2087 = vdwg.mxu0
    %v2088 = vmax.f32 %v1962, 0.0
    %v2089 = vmax.f32 %v1965, 0.0
    %v2090 = vmax.f32 %v1970, 0.0
    %v2091 = vmax.f32 %v1973, 0.0
    %v2092 = vmax.f32 %v1978, 0.0
    %v2093 = vmax.f32 %v1981, 0.0
    %v2094 = vmax.f32 %v1986, 0.0
    %v2095 = vmax.f32 %v1989, 0.0
    %v2096 = vmax.f32 %v1994, 0.0
    %v2097 = vmax.f32 %v1997, 0.0
    %v2098 = vmax.f32 %v2002, 0.0
    %v2099 = vmax.f32 %v2005, 0.0
    %v2100 = vmax.f32 %v2010, 0.0
    %v2101 = vmax.f32 %v2013, 0.0
    %v2102 = vmax.f32 %v2018, 0.0
    %v2103 = vmax.f32 %v2021, 0.0
    %v2104 = vmax.f32 %v2026, 0.0
    %v2105 = vmax.f32 %v2029, 0.0
    %v2106 = vmax.f32 %v2034, 0.0
    %v2107 = vmax.f32 %v2037, 0.0
    %v2108 = vmax.f32 %v2042, 0.0
    %v2109 = vmax.f32 %v2045, 0.0
    %v2110 = vmax.f32 %v2050, 0.0
    %v2111 = vmax.f32 %v2053, 0.0
    %v2112 = vmax.f32 %v2058, 0.0
    %v2113 = vmax.f32 %v2061, 0.0
    %v2114 = vmax.f32 %v2066, 0.0
    %v2115 = vmax.f32 %v2069, 0.0
    %v2116 = vmax.f32 %v2074, 0.0
    %v2117 = vmax.f32 %v2077, 0.0
    %v2118 = vmax.f32 %v2082, 0.0
    %v2119 = vmax.f32 %v2085, 0.0
    %v2120 = vpack.c.bf16 %v2089, %v2088
    %v2121 = vpack.c.bf16 %v2091, %v2090
    %v2122 = vpack.c.bf16 %v2093, %v2092
    %v2123 = vpack.c.bf16 %v2095, %v2094
    %v2124 = vpack.c.bf16 %v2097, %v2096
    %v2125 = vpack.c.bf16 %v2099, %v2098
    %v2126 = vpack.c.bf16 %v2101, %v2100
    %v2127 = vpack.c.bf16 %v2103, %v2102
    %v2128 = vpack.c.bf16 %v2105, %v2104
    %v2129 = vpack.c.bf16 %v2107, %v2106
    %v2130 = vpack.c.bf16 %v2109, %v2108
    %v2131 = vpack.c.bf16 %v2111, %v2110
    %v2132 = vpack.c.bf16 %v2113, %v2112
    %v2133 = vpack.c.bf16 %v2115, %v2114
    %v2134 = vpack.c.bf16 %v2117, %v2116
    %v2135 = vpack.c.bf16 %v2119, %v2118
    %v2136 = vld [vmem:[%s5] sm:$0xf]
    %v2137 = vld [vmem:[%s5 + $0x4] sm:$0xf]
    %v2138 = vld [vmem:[%s5 + $0x8] sm:$0xf]
    %v2139 = vld [vmem:[%s5 + $0xc] sm:$0xf]
    %v2140 = vld [vmem:[%s5 + $0x10] sm:$0xf]
    %v2141 = vld [vmem:[%s5 + $0x14] sm:$0xf]
    %v2142 = vld [vmem:[%s5 + $0x18] sm:$0xf]
    %v2143 = vld [vmem:[%s5 + $0x1c] sm:$0xf]
    %v2144 = vld [vmem:[%s5 + $0x20] sm:$0xf]
    %v2145 = vld [vmem:[%s5 + $0x24] sm:$0xf]
    %v2146 = vld [vmem:[%s5 + $0x28] sm:$0xf]
    %v2147 = vld [vmem:[%s5 + $0x2c] sm:$0xf]
    %v2148 = vld [vmem:[%s5 + $0x30] sm:$0xf]
    %v2149 = vld [vmem:[%s5 + $0x34] sm:$0xf]
    %v2150 = vld [vmem:[%s5 + $0x38] sm:$0xf]
    %v2151 = vld [vmem:[%s5 + $0x3c] sm:$0xf]
    %v2152 = vld [vmem:[%s6] sm:$0x1]
    %v2154 = vlaneseq
    %v2155 = vshrl.u32 %v2154, 7
    %v2156 = vsub.s32 0, %v2155
    %v2157 = vrot.slane %v2152, %v2156
    %v2175 = vunpack.c.l.b16 %v2136
    %v2176 = vunpack.c.l.b16 %v2137
    %v2177 = vunpack.c.l.b16 %v2138
    %v2178 = vunpack.c.l.b16 %v2139
    %v2179 = vunpack.c.l.b16 %v2140
    %v2180 = vunpack.c.l.b16 %v2141
    %v2181 = vunpack.c.l.b16 %v2142
    %v2182 = vunpack.c.l.b16 %v2143
    %v2183 = vunpack.c.l.b16 %v2144
    %v2184 = vunpack.c.l.b16 %v2145
    %v2185 = vunpack.c.l.b16 %v2146
    %v2186 = vunpack.c.l.b16 %v2147
    %v2187 = vunpack.c.l.b16 %v2148
    %v2188 = vunpack.c.l.b16 %v2149
    %v2189 = vunpack.c.l.b16 %v2150
    %v2190 = vunpack.c.l.b16 %v2151
    %v2191 = vpack.c.b16 %v2176, %v2175
    %v2192 = vpack.c.b16 %v2178, %v2177
    %v2193 = vpack.c.b16 %v2180, %v2179
    %v2194 = vpack.c.b16 %v2182, %v2181
    %v2195 = vpack.c.b16 %v2184, %v2183
    %v2196 = vpack.c.b16 %v2186, %v2185
    %v2197 = vpack.c.b16 %v2188, %v2187
    %v2198 = vpack.c.b16 %v2190, %v2189
    %2207 = vmatprep.subr.bf16.mxu0 0
    %2208 = vmatpush1.bf16.msra.mxu0 %v2191
    %2209 = vmatprep.subr.bf16.mxu0 0
    %2210 = vmatpush1.bf16.msra.mxu0 %v2192
    %2211 = vmatprep.subr.bf16.mxu0 0
    %2212 = vmatpush1.bf16.msra.mxu0 %v2193
    %2213 = vmatprep.subr.bf16.mxu0 0
    %2214 = vmatpush1.bf16.msra.mxu0 %v2194
    %2215 = vmatprep.subr.bf16.mxu0 0
    %2216 = vmatpush1.bf16.msra.mxu0 %v2195
    %2217 = vmatprep.subr.bf16.mxu0 0
    %2218 = vmatpush1.bf16.msra.mxu0 %v2196
    %2219 = vmatprep.subr.bf16.mxu0 0
    %2220 = vmatpush1.bf16.msra.mxu0 %v2197
    %2221 = vmatprep.subr.bf16.mxu0 0
    %2222 = vmatpush1.bf16.msra.mxu0 %v2198
    %2223 = vmatprep.subr.bf16.mxu0 0
    %2224 = vmatpush1.bf16.msra.mxu0 0
    %2225 = vmatprep.subr.bf16.mxu0 0
    %2226 = vmatpush1.bf16.msra.mxu0 0
    %2227 = vmatprep.subr.bf16.mxu0 0
    %2228 = vmatpush1.bf16.msra.mxu0 0
    %2229 = vmatprep.subr.bf16.mxu0 0
    %2230 = vmatpush1.bf16.msra.mxu0 0
    %2231 = vmatprep.subr.bf16.mxu0 0
    %2232 = vmatpush1.bf16.msra.mxu0 0
    %2233 = vmatprep.subr.bf16.mxu0 0
    %2234 = vmatpush1.bf16.msra.mxu0 0
    %2235 = vmatprep.subr.bf16.mxu0 0
    %2236 = vmatpush1.bf16.msra.mxu0 0
    %2237 = vmatprep.subr.bf16.mxu0 0
    %2238 = vmatpush1.bf16.msra.mxu0 0
    %2239 = vmatprep.mubr.bf16.mxu0 0
    %2240 = vmatmul.mubr.bf16.gmra.mrb[0].mxu0 %v2120
    %v2241 = vpop.f32.mrb[0].mxu0
    %v2242 = vadd.f32 %v2157, %v2241
    %v2243 = vpop.f32.mrb[0].mxu0
    %v2244 = vpop.f32.mrb[0].mxu0
    %v2245 = vadd.f32 %v2157, %v2244
    %v2246 = vpop.f32.mrb[0].mxu0
    %2247 = vmatprep.mubr.bf16.mxu0 0
    %2248 = vmatmul.mubr.bf16.gmra.mrb[0].mxu0 %v2121
    %v2249 = vpop.f32.mrb[0].mxu0
    %v2250 = vadd.f32 %v2157, %v2249
    %v2251 = vpop.f32.mrb[0].mxu0
    %v2252 = vpop.f32.mrb[0].mxu0
    %v2253 = vadd.f32 %v2157, %v2252
    %v2254 = vpop.f32.mrb[0].mxu0
    %2255 = vmatprep.mubr.bf16.mxu0 0
    %2256 = vmatmul.mubr.bf16.gmra.mrb[0].mxu0 %v2122
    %v2257 = vpop.f32.mrb[0].mxu0
    %v2258 = vadd.f32 %v2157, %v2257
    %v2259 = vpop.f32.mrb[0].mxu0
    %v2260 = vpop.f32.mrb[0].mxu0
    %v2261 = vadd.f32 %v2157, %v2260
    %v2262 = vpop.f32.mrb[0].mxu0
    %2263 = vmatprep.mubr.bf16.mxu0 0
    %2264 = vmatmul.mubr.bf16.gmra.mrb[0].mxu0 %v2123
    %v2265 = vpop.f32.mrb[0].mxu0
    %v2266 = vadd.f32 %v2157, %v2265
    %v2267 = vpop.f32.mrb[0].mxu0
    %v2268 = vpop.f32.mrb[0].mxu0
    %v2269 = vadd.f32 %v2157, %v2268
    %v2270 = vpop.f32.mrb[0].mxu0
    %2271 = vmatprep.mubr.bf16.mxu0 0
    %2272 = vmatmul.mubr.bf16.gmra.mrb[0].mxu0 %v2124
    %v2273 = vpop.f32.mrb[0].mxu0
    %v2274 = vadd.f32 %v2157, %v2273
    %v2275 = vpop.f32.mrb[0].mxu0
    %v2276 = vpop.f32.mrb[0].mxu0
    %v2277 = vadd.f32 %v2157, %v2276
    %v2278 = vpop.f32.mrb[0].mxu0
    %2279 = vmatprep.mubr.bf16.mxu0 0
    %2280 = vmatmul.mubr.bf16.gmra.mrb[0].mxu0 %v2125
    %v2281 = vpop.f32.mrb[0].mxu0
    %v2282 = vadd.f32 %v2157, %v2281
    %v2283 = vpop.f32.mrb[0].mxu0
    %v2284 = vpop.f32.mrb[0].mxu0
    %v2285 = vadd.f32 %v2157, %v2284
    %v2286 = vpop.f32.mrb[0].mxu0
    %2287 = vmatprep.mubr.bf16.mxu0 0
    %2288 = vmatmul.mubr.bf16.gmra.mrb[0].mxu0 %v2126
    %v2289 = vpop.f32.mrb[0].mxu0
    %v2290 = vadd.f32 %v2157, %v2289
    %v2291 = vpop.f32.mrb[0].mxu0
    %v2292 = vpop.f32.mrb[0].mxu0
    %v2293 = vadd.f32 %v2157, %v2292
    %v2294 = vpop.f32.mrb[0].mxu0
    %2295 = vmatprep.mubr.bf16.mxu0 0
    %2296 = vmatmul.mubr.bf16.gmra.mrb[0].mxu0 %v2127
    %v2297 = vpop.f32.mrb[0].mxu0
    %v2298 = vadd.f32 %v2157, %v2297
    %v2299 = vpop.f32.mrb[0].mxu0
    %v2300 = vpop.f32.mrb[0].mxu0
    %v2301 = vadd.f32 %v2157, %v2300
    %v2302 = vpop.f32.mrb[0].mxu0
    %2303 = vmatprep.mubr.bf16.mxu0 0
    %2304 = vmatmul.mubr.bf16.gmra.mrb[0].mxu0 %v2128
    %v2305 = vpop.f32.mrb[0].mxu0
    %v2306 = vadd.f32 %v2157, %v2305
    %v2307 = vpop.f32.mrb[0].mxu0
    %v2308 = vpop.f32.mrb[0].mxu0
    %v2309 = vadd.f32 %v2157, %v2308
    %v2310 = vpop.f32.mrb[0].mxu0
    %2311 = vmatprep.mubr.bf16.mxu0 0
    %2312 = vmatmul.mubr.bf16.gmra.mrb[0].mxu0 %v2129
    %v2313 = vpop.f32.mrb[0].mxu0
    %v2314 = vadd.f32 %v2157, %v2313
    %v2315 = vpop.f32.mrb[0].mxu0
    %v2316 = vpop.f32.mrb[0].mxu0
    %v2317 = vadd.f32 %v2157, %v2316
    %v2318 = vpop.f32.mrb[0].mxu0
    %2319 = vmatprep.mubr.bf16.mxu0 0
    %2320 = vmatmul.mubr.bf16.gmra.mrb[0].mxu0 %v2130
    %v2321 = vpop.f32.mrb[0].mxu0
    %v2322 = vadd.f32 %v2157, %v2321
    %v2323 = vpop.f32.mrb[0].mxu0
    %v2324 = vpop.f32.mrb[0].mxu0
    %v2325 = vadd.f32 %v2157, %v2324
    %v2326 = vpop.f32.mrb[0].mxu0
    %2327 = vmatprep.mubr.bf16.mxu0 0
    %2328 = vmatmul.mubr.bf16.gmra.mrb[0].mxu0 %v2131
    %v2329 = vpop.f32.mrb[0].mxu0
    %v2330 = vadd.f32 %v2157, %v2329
    %v2331 = vpop.f32.mrb[0].mxu0
    %v2332 = vpop.f32.mrb[0].mxu0
    %v2333 = vadd.f32 %v2157, %v2332
    %v2334 = vpop.f32.mrb[0].mxu0
    %2335 = vmatprep.mubr.bf16.mxu0 0
    %2336 = vmatmul.mubr.bf16.gmra.mrb[0].mxu0 %v2132
    %v2337 = vpop.f32.mrb[0].mxu0
    %v2338 = vadd.f32 %v2157, %v2337
    %v2339 = vpop.f32.mrb[0].mxu0
    %v2340 = vpop.f32.mrb[0].mxu0
    %v2341 = vadd.f32 %v2157, %v2340
    %v2342 = vpop.f32.mrb[0].mxu0
    %2343 = vmatprep.mubr.bf16.mxu0 0
    %2344 = vmatmul.mubr.bf16.gmra.mrb[0].mxu0 %v2133
    %v2345 = vpop.f32.mrb[0].mxu0
    %v2346 = vadd.f32 %v2157, %v2345
    %v2347 = vpop.f32.mrb[0].mxu0
    %v2348 = vpop.f32.mrb[0].mxu0
    %v2349 = vadd.f32 %v2157, %v2348
    %v2350 = vpop.f32.mrb[0].mxu0
    %2351 = vmatprep.mubr.bf16.mxu0 0
    %2352 = vmatmul.mubr.bf16.gmra.mrb[0].mxu0 %v2134
    %v2353 = vpop.f32.mrb[0].mxu0
    %v2354 = vadd.f32 %v2157, %v2353
    %v2355 = vpop.f32.mrb[0].mxu0
    %v2356 = vpop.f32.mrb[0].mxu0
    %v2357 = vadd.f32 %v2157, %v2356
    %v2358 = vpop.f32.mrb[0].mxu0
    %2359 = vmatprep.mubr.bf16.mxu0 0
    %2360 = vmatmul.mubr.bf16.gmra.mrb[0].mxu0 %v2135
    %v2361 = vpop.f32.mrb[0].mxu0
    %v2362 = vadd.f32 %v2157, %v2361
    %v2363 = vpop.f32.mrb[0].mxu0
    %v2364 = vpop.f32.mrb[0].mxu0
    %v2365 = vadd.f32 %v2157, %v2364
    %v2366 = vpop.f32.mrb[0].mxu0
    %2367 = vdwg.mxu0
    %2368 = vmax.xlane.f32.xlu0 %v2242
    %v2369 = vpop.xlane.xlu0 %2368
    %2370 = vmax.xlane.f32.xlu0 %v2245
    %v2371 = vpop.xlane.xlu0 %2370
    %2372 = vmax.xlane.f32.xlu0 %v2250
    %v2373 = vpop.xlane.xlu0 %2372
    %2374 = vmax.xlane.f32.xlu0 %v2253
    %v2375 = vpop.xlane.xlu0 %2374
    %2376 = vmax.xlane.f32.xlu0 %v2258
    %v2377 = vpop.xlane.xlu0 %2376
    %2378 = vmax.xlane.f32.xlu0 %v2261
    %v2379 = vpop.xlane.xlu0 %2378
    %2380 = vmax.xlane.f32.xlu0 %v2266
    %v2381 = vpop.xlane.xlu0 %2380
    %2382 = vmax.xlane.f32.xlu0 %v2269
    %v2383 = vpop.xlane.xlu0 %2382
    %2384 = vmax.xlane.f32.xlu0 %v2274
    %v2385 = vpop.xlane.xlu0 %2384
    %2386 = vmax.xlane.f32.xlu0 %v2277
    %v2387 = vpop.xlane.xlu0 %2386
    %2388 = vmax.xlane.f32.xlu0 %v2282
    %v2389 = vpop.xlane.xlu0 %2388
    %2390 = vmax.xlane.f32.xlu0 %v2285
    %v2391 = vpop.xlane.xlu0 %2390
    %2392 = vmax.xlane.f32.xlu0 %v2290
    %v2393 = vpop.xlane.xlu0 %2392
    %2394 = vmax.xlane.f32.xlu0 %v2293
    %v2395 = vpop.xlane.xlu0 %2394
    %2396 = vmax.xlane.f32.xlu0 %v2298
    %v2397 = vpop.xlane.xlu0 %2396
    %2398 = vmax.xlane.f32.xlu0 %v2301
    %v2399 = vpop.xlane.xlu0 %2398
    %2400 = vmax.xlane.f32.xlu0 %v2306
    %v2401 = vpop.xlane.xlu0 %2400
    %2402 = vmax.xlane.f32.xlu0 %v2309
    %v2403 = vpop.xlane.xlu0 %2402
    %2404 = vmax.xlane.f32.xlu0 %v2314
    %v2405 = vpop.xlane.xlu0 %2404
    %2406 = vmax.xlane.f32.xlu0 %v2317
    %v2407 = vpop.xlane.xlu0 %2406
    %2408 = vmax.xlane.f32.xlu0 %v2322
    %v2409 = vpop.xlane.xlu0 %2408
    %2410 = vmax.xlane.f32.xlu0 %v2325
    %v2411 = vpop.xlane.xlu0 %2410
    %2412 = vmax.xlane.f32.xlu0 %v2330
    %v2413 = vpop.xlane.xlu0 %2412
    %2414 = vmax.xlane.f32.xlu0 %v2333
    %v2415 = vpop.xlane.xlu0 %2414
    %2416 = vmax.xlane.f32.xlu0 %v2338
    %v2417 = vpop.xlane.xlu0 %2416
    %2418 = vmax.xlane.f32.xlu0 %v2341
    %v2419 = vpop.xlane.xlu0 %2418
    %2420 = vmax.xlane.f32.xlu0 %v2346
    %v2421 = vpop.xlane.xlu0 %2420
    %2422 = vmax.xlane.f32.xlu0 %v2349
    %v2423 = vpop.xlane.xlu0 %2422
    %2424 = vmax.xlane.f32.xlu0 %v2354
    %v2425 = vpop.xlane.xlu0 %2424
    %2426 = vmax.xlane.f32.xlu0 %v2357
    %v2427 = vpop.xlane.xlu0 %2426
    %2428 = vmax.xlane.f32.xlu0 %v2362
    %v2429 = vpop.xlane.xlu0 %2428
    %2430 = vmax.xlane.f32.xlu0 %v2365
    %v2431 = vpop.xlane.xlu0 %2430
    %v2432 = vsub.f32 %v2242, %v2369
    %v2433 = vsub.f32 %v2245, %v2371
    %v2434 = vsub.f32 %v2250, %v2373
    %v2435 = vsub.f32 %v2253, %v2375
    %v2436 = vsub.f32 %v2258, %v2377
    %v2437 = vsub.f32 %v2261, %v2379
    %v2438 = vsub.f32 %v2266, %v2381
    %v2439 = vsub.f32 %v2269, %v2383
    %v2440 = vsub.f32 %v2274, %v2385
    %v2441 = vsub.f32 %v2277, %v2387
    %v2442 = vsub.f32 %v2282, %v2389
    %v2443 = vsub.f32 %v2285, %v2391
    %v2444 = vsub.f32 %v2290, %v2393
    %v2445 = vsub.f32 %v2293, %v2395
    %v2446 = vsub.f32 %v2298, %v2397
    %v2447 = vsub.f32 %v2301, %v2399
    %v2448 = vsub.f32 %v2306, %v2401
    %v2449 = vsub.f32 %v2309, %v2403
    %v2450 = vsub.f32 %v2314, %v2405
    %v2451 = vsub.f32 %v2317, %v2407
    %v2452 = vsub.f32 %v2322, %v2409
    %v2453 = vsub.f32 %v2325, %v2411
    %v2454 = vsub.f32 %v2330, %v2413
    %v2455 = vsub.f32 %v2333, %v2415
    %v2456 = vsub.f32 %v2338, %v2417
    %v2457 = vsub.f32 %v2341, %v2419
    %v2458 = vsub.f32 %v2346, %v2421
    %v2459 = vsub.f32 %v2349, %v2423
    %v2460 = vsub.f32 %v2354, %v2425
    %v2461 = vsub.f32 %v2357, %v2427
    %v2462 = vsub.f32 %v2362, %v2429
    %v2463 = vsub.f32 %v2365, %v2431
    %v2464 = vmul.f32 %v2432, 1.442695
    %v2465 = vpow.pop %v2464
    %v2466 = vmul.f32 %v2433, 1.442695
    %v2467 = vpow.pop %v2466
    %v2468 = vmul.f32 %v2434, 1.442695
    %v2469 = vpow.pop %v2468
    %v2470 = vmul.f32 %v2435, 1.442695
    %v2471 = vpow.pop %v2470
    %v2472 = vmul.f32 %v2436, 1.442695
    %v2473 = vpow.pop %v2472
    %v2474 = vmul.f32 %v2437, 1.442695
    %v2475 = vpow.pop %v2474
    %v2476 = vmul.f32 %v2438, 1.442695
    %v2477 = vpow.pop %v2476
    %v2478 = vmul.f32 %v2439, 1.442695
    %v2479 = vpow.pop %v2478
    %v2480 = vmul.f32 %v2440, 1.442695
    %v2481 = vpow.pop %v2480
    %v2482 = vmul.f32 %v2441, 1.442695
    %v2483 = vpow.pop %v2482
    %v2484 = vmul.f32 %v2442, 1.442695
    %v2485 = vpow.pop %v2484
    %v2486 = vmul.f32 %v2443, 1.442695
    %v2487 = vpow.pop %v2486
    %v2488 = vmul.f32 %v2444, 1.442695
    %v2489 = vpow.pop %v2488
    %v2490 = vmul.f32 %v2445, 1.442695
    %v2491 = vpow.pop %v2490
    %v2492 = vmul.f32 %v2446, 1.442695
    %v2493 = vpow.pop %v2492
    %v2494 = vmul.f32 %v2447, 1.442695
    %v2495 = vpow.pop %v2494
    %v2496 = vmul.f32 %v2448, 1.442695
    %v2497 = vpow.pop %v2496
    %v2498 = vmul.f32 %v2449, 1.442695
    %v2499 = vpow.pop %v2498
    %v2500 = vmul.f32 %v2450, 1.442695
    %v2501 = vpow.pop %v2500
    %v2502 = vmul.f32 %v2451, 1.442695
    %v2503 = vpow.pop %v2502
    %v2504 = vmul.f32 %v2452, 1.442695
    %v2505 = vpow.pop %v2504
    %v2506 = vmul.f32 %v2453, 1.442695
    %v2507 = vpow.pop %v2506
    %v2508 = vmul.f32 %v2454, 1.442695
    %v2509 = vpow.pop %v2508
    %v2510 = vmul.f32 %v2455, 1.442695
    %v2511 = vpow.pop %v2510
    %v2512 = vmul.f32 %v2456, 1.442695
    %v2513 = vpow.pop %v2512
    %v2514 = vmul.f32 %v2457, 1.442695
    %v2515 = vpow.pop %v2514
    %v2516 = vmul.f32 %v2458, 1.442695
    %v2517 = vpow.pop %v2516
    %v2518 = vmul.f32 %v2459, 1.442695
    %v2519 = vpow.pop %v2518
    %v2520 = vmul.f32 %v2460, 1.442695
    %v2521 = vpow.pop %v2520
    %v2522 = vmul.f32 %v2461, 1.442695
    %v2523 = vpow.pop %v2522
    %v2524 = vmul.f32 %v2462, 1.442695
    %v2525 = vpow.pop %v2524
    %v2526 = vmul.f32 %v2463, 1.442695
    %v2527 = vpow.pop %v2526
    %2528 = vadd.xlane.f32.xlu0 %v2465
    %v2529 = vpop.xlane.xlu0 %2528
    %2530 = vadd.xlane.f32.xlu0 %v2467
    %v2531 = vpop.xlane.xlu0 %2530
    %2532 = vadd.xlane.f32.xlu0 %v2469
    %v2533 = vpop.xlane.xlu0 %2532
    %2534 = vadd.xlane.f32.xlu0 %v2471
    %v2535 = vpop.xlane.xlu0 %2534
    %2536 = vadd.xlane.f32.xlu0 %v2473
    %v2537 = vpop.xlane.xlu0 %2536
    %2538 = vadd.xlane.f32.xlu0 %v2475
    %v2539 = vpop.xlane.xlu0 %2538
    %2540 = vadd.xlane.f32.xlu0 %v2477
    %v2541 = vpop.xlane.xlu0 %2540
    %2542 = vadd.xlane.f32.xlu0 %v2479
    %v2543 = vpop.xlane.xlu0 %2542
    %2544 = vadd.xlane.f32.xlu0 %v2481
    %v2545 = vpop.xlane.xlu0 %2544
    %2546 = vadd.xlane.f32.xlu0 %v2483
    %v2547 = vpop.xlane.xlu0 %2546
    %2548 = vadd.xlane.f32.xlu0 %v2485
    %v2549 = vpop.xlane.xlu0 %2548
    %2550 = vadd.xlane.f32.xlu0 %v2487
    %v2551 = vpop.xlane.xlu0 %2550
    %2552 = vadd.xlane.f32.xlu0 %v2489
    %v2553 = vpop.xlane.xlu0 %2552
    %2554 = vadd.xlane.f32.xlu0 %v2491
    %v2555 = vpop.xlane.xlu0 %2554
    %2556 = vadd.xlane.f32.xlu0 %v2493
    %v2557 = vpop.xlane.xlu0 %2556
    %2558 = vadd.xlane.f32.xlu0 %v2495
    %v2559 = vpop.xlane.xlu0 %2558
    %2560 = vadd.xlane.f32.xlu0 %v2497
    %v2561 = vpop.xlane.xlu0 %2560
    %2562 = vadd.xlane.f32.xlu0 %v2499
    %v2563 = vpop.xlane.xlu0 %2562
    %2564 = vadd.xlane.f32.xlu0 %v2501
    %v2565 = vpop.xlane.xlu0 %2564
    %2566 = vadd.xlane.f32.xlu0 %v2503
    %v2567 = vpop.xlane.xlu0 %2566
    %2568 = vadd.xlane.f32.xlu0 %v2505
    %v2569 = vpop.xlane.xlu0 %2568
    %2570 = vadd.xlane.f32.xlu0 %v2507
    %v2571 = vpop.xlane.xlu0 %2570
    %2572 = vadd.xlane.f32.xlu0 %v2509
    %v2573 = vpop.xlane.xlu0 %2572
    %2574 = vadd.xlane.f32.xlu0 %v2511
    %v2575 = vpop.xlane.xlu0 %2574
    %2576 = vadd.xlane.f32.xlu0 %v2513
    %v2577 = vpop.xlane.xlu0 %2576
    %2578 = vadd.xlane.f32.xlu0 %v2515
    %v2579 = vpop.xlane.xlu0 %2578
    %2580 = vadd.xlane.f32.xlu0 %v2517
    %v2581 = vpop.xlane.xlu0 %2580
    %2582 = vadd.xlane.f32.xlu0 %v2519
    %v2583 = vpop.xlane.xlu0 %2582
    %2584 = vadd.xlane.f32.xlu0 %v2521
    %v2585 = vpop.xlane.xlu0 %2584
    %2586 = vadd.xlane.f32.xlu0 %v2523
    %v2587 = vpop.xlane.xlu0 %2586
    %2588 = vadd.xlane.f32.xlu0 %v2525
    %v2589 = vpop.xlane.xlu0 %2588
    %2590 = vadd.xlane.f32.xlu0 %v2527
    %v2591 = vpop.xlane.xlu0 %2590
    %v2592 = vlog2.pop %v2529
    %v2593 = vmul.f32 %v2592, 0.6931472
    %v2594 = vlog2.pop %v2531
    %v2595 = vmul.f32 %v2594, 0.6931472
    %v2596 = vlog2.pop %v2533
    %v2597 = vmul.f32 %v2596, 0.6931472
    %v2598 = vlog2.pop %v2535
    %v2599 = vmul.f32 %v2598, 0.6931472
    %v2600 = vlog2.pop %v2537
    %v2601 = vmul.f32 %v2600, 0.6931472
    %v2602 = vlog2.pop %v2539
    %v2603 = vmul.f32 %v2602, 0.6931472
    %v2604 = vlog2.pop %v2541
    %v2605 = vmul.f32 %v2604, 0.6931472
    %v2606 = vlog2.pop %v2543
    %v2607 = vmul.f32 %v2606, 0.6931472
    %v2608 = vlog2.pop %v2545
    %v2609 = vmul.f32 %v2608, 0.6931472
    %v2610 = vlog2.pop %v2547
    %v2611 = vmul.f32 %v2610, 0.6931472
    %v2612 = vlog2.pop %v2549
    %v2613 = vmul.f32 %v2612, 0.6931472
    %v2614 = vlog2.pop %v2551
    %v2615 = vmul.f32 %v2614, 0.6931472
    %v2616 = vlog2.pop %v2553
    %v2617 = vmul.f32 %v2616, 0.6931472
    %v2618 = vlog2.pop %v2555
    %v2619 = vmul.f32 %v2618, 0.6931472
    %v2620 = vlog2.pop %v2557
    %v2621 = vmul.f32 %v2620, 0.6931472
    %v2622 = vlog2.pop %v2559
    %v2623 = vmul.f32 %v2622, 0.6931472
    %v2624 = vlog2.pop %v2561
    %v2625 = vmul.f32 %v2624, 0.6931472
    %v2626 = vlog2.pop %v2563
    %v2627 = vmul.f32 %v2626, 0.6931472
    %v2628 = vlog2.pop %v2565
    %v2629 = vmul.f32 %v2628, 0.6931472
    %v2630 = vlog2.pop %v2567
    %v2631 = vmul.f32 %v2630, 0.6931472
    %v2632 = vlog2.pop %v2569
    %v2633 = vmul.f32 %v2632, 0.6931472
    %v2634 = vlog2.pop %v2571
    %v2635 = vmul.f32 %v2634, 0.6931472
    %v2636 = vlog2.pop %v2573
    %v2637 = vmul.f32 %v2636, 0.6931472
    %v2638 = vlog2.pop %v2575
    %v2639 = vmul.f32 %v2638, 0.6931472
    %v2640 = vlog2.pop %v2577
    %v2641 = vmul.f32 %v2640, 0.6931472
    %v2642 = vlog2.pop %v2579
    %v2643 = vmul.f32 %v2642, 0.6931472
    %v2644 = vlog2.pop %v2581
    %v2645 = vmul.f32 %v2644, 0.6931472
    %v2646 = vlog2.pop %v2583
    %v2647 = vmul.f32 %v2646, 0.6931472
    %v2648 = vlog2.pop %v2585
    %v2649 = vmul.f32 %v2648, 0.6931472
    %v2650 = vlog2.pop %v2587
    %v2651 = vmul.f32 %v2650, 0.6931472
    %v2652 = vlog2.pop %v2589
    %v2653 = vmul.f32 %v2652, 0.6931472
    %v2654 = vlog2.pop %v2591
    %v2655 = vmul.f32 %v2654, 0.6931472
    %v2656 = vsub.f32 %v2432, %v2593
    %v2657 = vsub.f32 %v2433, %v2595
    %v2658 = vsub.f32 %v2434, %v2597
    %v2659 = vsub.f32 %v2435, %v2599
    %v2660 = vsub.f32 %v2436, %v2601
    %v2661 = vsub.f32 %v2437, %v2603
    %v2662 = vsub.f32 %v2438, %v2605
    %v2663 = vsub.f32 %v2439, %v2607
    %v2664 = vsub.f32 %v2440, %v2609
    %v2665 = vsub.f32 %v2441, %v2611
    %v2666 = vsub.f32 %v2442, %v2613
    %v2667 = vsub.f32 %v2443, %v2615
    %v2668 = vsub.f32 %v2444, %v2617
    %v2669 = vsub.f32 %v2445, %v2619
    %v2670 = vsub.f32 %v2446, %v2621
    %v2671 = vsub.f32 %v2447, %v2623
    %v2672 = vsub.f32 %v2448, %v2625
    %v2673 = vsub.f32 %v2449, %v2627
    %v2674 = vsub.f32 %v2450, %v2629
    %v2675 = vsub.f32 %v2451, %v2631
    %v2676 = vsub.f32 %v2452, %v2633
    %v2677 = vsub.f32 %v2453, %v2635
    %v2678 = vsub.f32 %v2454, %v2637
    %v2679 = vsub.f32 %v2455, %v2639
    %v2680 = vsub.f32 %v2456, %v2641
    %v2681 = vsub.f32 %v2457, %v2643
    %v2682 = vsub.f32 %v2458, %v2645
    %v2683 = vsub.f32 %v2459, %v2647
    %v2684 = vsub.f32 %v2460, %v2649
    %v2685 = vsub.f32 %v2461, %v2651
    %v2686 = vsub.f32 %v2462, %v2653
    %v2687 = vsub.f32 %v2463, %v2655
    %2688 = vst [vmem:[#allocation2] sm:$0xff] %v2656
    %2689 = vst [vmem:[#allocation2 + $0x8] sm:$0xff] %v2657
    %2690 = vst [vmem:[#allocation2 + $0x10] sm:$0xff] %v2658
    %2691 = vst [vmem:[#allocation2 + $0x18] sm:$0xff] %v2659
    %2692 = vst [vmem:[#allocation2 + $0x20] sm:$0xff] %v2660
    %2693 = vst [vmem:[#allocation2 + $0x28] sm:$0xff] %v2661
    %2694 = vst [vmem:[#allocation2 + $0x30] sm:$0xff] %v2662
    %2695 = vst [vmem:[#allocation2 + $0x38] sm:$0xff] %v2663
    %2696 = vst [vmem:[#allocation2 + $0x40] sm:$0xff] %v2664
    %2697 = vst [vmem:[#allocation2 + $0x48] sm:$0xff] %v2665
    %2698 = vst [vmem:[#allocation2 + $0x50] sm:$0xff] %v2666
    %2699 = vst [vmem:[#allocation2 + $0x58] sm:$0xff] %v2667
    %2700 = vst [vmem:[#allocation2 + $0x60] sm:$0xff] %v2668
    %2701 = vst [vmem:[#allocation2 + $0x68] sm:$0xff] %v2669
    %2702 = vst [vmem:[#allocation2 + $0x70] sm:$0xff] %v2670
    %2703 = vst [vmem:[#allocation2 + $0x78] sm:$0xff] %v2671
    %2704 = vst [vmem:[#allocation2 + $0x80] sm:$0xff] %v2672
    %2705 = vst [vmem:[#allocation2 + $0x88] sm:$0xff] %v2673
    %2706 = vst [vmem:[#allocation2 + $0x90] sm:$0xff] %v2674
    %2707 = vst [vmem:[#allocation2 + $0x98] sm:$0xff] %v2675
    %2708 = vst [vmem:[#allocation2 + $0xa0] sm:$0xff] %v2676
    %2709 = vst [vmem:[#allocation2 + $0xa8] sm:$0xff] %v2677
    %2710 = vst [vmem:[#allocation2 + $0xb0] sm:$0xff] %v2678
    %2711 = vst [vmem:[#allocation2 + $0xb8] sm:$0xff] %v2679
    %2712 = vst [vmem:[#allocation2 + $0xc0] sm:$0xff] %v2680
    %2713 = vst [vmem:[#allocation2 + $0xc8] sm:$0xff] %v2681
    %2714 = vst [vmem:[#allocation2 + $0xd0] sm:$0xff] %v2682
    %2715 = vst [vmem:[#allocation2 + $0xd8] sm:$0xff] %v2683
    %2716 = vst [vmem:[#allocation2 + $0xe0] sm:$0xff] %v2684
    %2717 = vst [vmem:[#allocation2 + $0xe8] sm:$0xff] %v2685
    %2718 = vst [vmem:[#allocation2 + $0xf0] sm:$0xff] %v2686
    %2719 = vst [vmem:[#allocation2 + $0xf8] sm:$0xff] %v2687
    // Predicated region
    $region30: #{tpu_custom_call.1} parent=1 // pred_check
      _
    $region31: #{tpu_custom_call.1} parent=1 // pred_check_branch
      %2721 = sbr.rel (0) target = $region33
    $region32: #{tpu_custom_call.1} parent=1 // pred_region
      %s2723 = ssub.s32 4096, 4096
      %2724 = vsyncadd [#allocation3], %s2723
      %s2725 = sshll.u32 [#allocation2], 4
      %s2726 = int_to_ptr.vmem [resolvable:$true] %s2725
      %2731 = dma.vmem_to_hbm [thread:$0]  %s2726, 4096, %s7, [#allocation3], 128, 128, 8
    $region33: #{tpu_custom_call.1} parent=1 // pred_fallthru
      _
    // Predicated region
    $region34: #{tpu_custom_call.1} parent=1 // pred_check
      _
    $region35: #{tpu_custom_call.1} parent=1 // pred_check_branch
      %2733 = sbr.rel (0) target = $region37
    $region36: #{tpu_custom_call.1} parent=1 // pred_region
      %2734 = dma.done [#allocation3], 4096
    $region37: #{tpu_custom_call.1} parent=1 // pred_fallthru
      _
    %2735 = vsyncpa [#allocation3], 1

</llo_original>
